<compile_context>
chip_gen: v7x
topology: tpu7x:2x2x1
jax: 0.10.0
libtpu: 0.0.40
codegen_flags: <defaults>
</compile_context>

<pallas_src>
import functools
import math

import jax
import jax.numpy as jnp
from jax.experimental import pallas as pl
from jax.experimental.pallas import tpu as pltpu


# MXU operand precision (accumulation is always f32). Set to jnp.float32 for exact-f32 convs.
_MXU_DTYPE = jnp.bfloat16


def _round_up(x, m):
    return ((x + m - 1) // m) * m


# ---------------------------------------------------------------------------
# Schedule, time embedding, parameters (plain-JAX glue, matches the reference)
# ---------------------------------------------------------------------------

def make_schedule(num_timesteps=1000, beta_start=1e-4, beta_end=0.02):
    betas = jnp.linspace(beta_start, beta_end, num_timesteps, dtype=jnp.float32)
    alphas = 1.0 - betas
    alphas_cumprod = jnp.cumprod(alphas)
    return {
        "betas": betas,
        "alphas": alphas,
        "alphas_cumprod": alphas_cumprod,
        "sqrt_alphas_cumprod": jnp.sqrt(alphas_cumprod),
        "sqrt_one_minus_alphas_cumprod": jnp.sqrt(1.0 - alphas_cumprod),
    }


def timestep_embedding(t, dim):
    half = dim // 2
    freqs = jnp.exp(-math.log(10000.0) * jnp.arange(half, dtype=jnp.float32) / half)
    args = t.astype(jnp.float32)[:, None] * freqs[None, :]
    return jnp.concatenate([jnp.sin(args), jnp.cos(args)], axis=-1)  # (B, dim)


def init_params(key, c_in=4, c_hid=32, t_dim=32):
    ks = jax.random.split(key, 3)

    def w(k, shape, fan_in):
        return jax.random.normal(k, shape, jnp.float32) / math.sqrt(fan_in)

    return {
        "w_t": w(ks[0], (t_dim, c_hid), t_dim),
        "b_t": jnp.zeros((c_hid,), jnp.float32),
        "w1": w(ks[1], (3, 3, c_in, c_hid), 9 * c_in),
        "b1": jnp.zeros((c_hid,), jnp.float32),
        "w2": w(ks[2], (3, 3, c_hid, c_in), 9 * c_hid),
        "b2": jnp.zeros((c_in,), jnp.float32),
    }


# ---------------------------------------------------------------------------
# Fused Pallas kernel: perturb -> conv1 -> bias+SiLU -> conv2 -> residual -> MSE
# ---------------------------------------------------------------------------
#
# Per-sample canvas layout (channel-first, spatial flattened into lanes):
#   flat column  col = r * WC + s   (canvas row r, canvas col s; WC is a power of 2)
#   x_t / noise image lives at canvas (r, s) = (2 + i, 2 + j)  for image (i, j)
#   conv1 output image lands at canvas (1 + i, 1 + j)   (tap offsets are all >= 0)
#   conv2 output image lands at canvas (i, j)
# The zero-initialized ring of the canvases provides the conv zero padding; the
# non-image conv outputs are zeroed with an iota-derived interior mask.

def _ddpm_kernel(sa_ref, sb_ref, x0_ref, ns_ref, tb_ref, w1t_ref, w2t_ref, b2_ref,
                 loss_ref, xt_ref, nz_ref, h1_ref, *, H, W, C, CH, WC, PM):
    b = pl.program_id(0)

    @pl.when(b == 0)
    def _():
        loss_ref[0, 0] = jnp.float32(0.0)

    # --- init: zero canvases (their ring/tail is the convs' zero padding) ---------
    xt_ref[...] = jnp.zeros_like(xt_ref)
    nz_ref[...] = jnp.zeros_like(nz_ref)
    h1_ref[...] = jnp.zeros_like(h1_ref)

    # --- (1) forward diffusion (f32), scattered into the canvas interior ----------
    sa_b = sa_ref[b]
    sb_b = sb_ref[b]
    x0v = x0_ref[0]                         # (C, H*W) f32, lane-dense
    nsv = ns_ref[0]
    pert = sa_b * x0v + sb_b * nsv          # x_t in compact layout
    for r in range(H):                      # scatter image rows into the padded canvas
        src = slice(r * W, (r + 1) * W)
        d0 = (r + 2) * WC + 2
        dst = slice(d0, d0 + W)
        xt_ref[:, dst] = pert[:, src]
        nz_ref[:, dst] = nsv[:, src]

    # --- interior masks via in-kernel iota (WC is a power of two: shift/and only) --
    col = jax.lax.broadcasted_iota(jnp.int32, (1, PM), 1)
    shift = WC.bit_length() - 1
    ci = jnp.right_shift(col, shift)
    cj = jnp.bitwise_and(col, WC - 1)
    m_h1 = ((ci >= 1) & (ci <= H) & (cj >= 1) & (cj <= W)).astype(jnp.float32)
    m_out = ((ci < H) & (cj < W)).astype(jnp.float32)

    # --- (2) conv1 (3x3, pad 1) as ONE MXU matmul: (CH, 9C) @ (9C, PM) -------------
    p1 = jnp.concatenate(
        [xt_ref[:, (di * WC + dj):(di * WC + dj) + PM]
         for di in range(3) for dj in range(3)],
        axis=0,
    ).astype(w1t_ref.dtype)                                            # (9*C, PM)
    hpre = jnp.dot(w1t_ref[...], p1, preferred_element_type=jnp.float32)  # (CH, PM)

    # --- per-sample (time + conv1) bias, SiLU in f32, zero the non-image ring ------
    v = hpre + tb_ref[0]                                               # (CH, PM)+(CH, 1)
    h1_ref[:, 0:PM] = (v * jax.nn.sigmoid(v) * m_h1).astype(h1_ref.dtype)

    # --- (3) conv2 (3x3, pad 1) as ONE MXU matmul: (C, 9CH) @ (9CH, PM) ------------
    p2 = jnp.concatenate(
        [h1_ref[:, (di * WC + dj):(di * WC + dj) + PM]
         for di in range(3) for dj in range(3)],
        axis=0,
    )                                                                  # (9*CH, PM) bf16
    y2 = jnp.dot(w2t_ref[...], p2, preferred_element_type=jnp.float32)  # (C, PM)

    # --- (4) residual + masked MSE partial sum (lane-dense, f32) -------------------
    off = 2 * WC + 2
    d = (y2 + b2_ref[...] + xt_ref[:, off:off + PM] - nz_ref[:, off:off + PM]) * m_out
    loss_ref[0, 0] += jnp.sum(d * d)


def fused_ddpm_loss(params, x0, noise, sa, sb, t):
    """Everything after the RNG draws, fused into a single pallas_call.

    x0, noise : (B, C, H, W)  NCHW (as in the PyTorch module)
    sa, sb    : (B,)          per-batch schedule coefficients (extract())
    t         : (B,)          integer timesteps
    Returns the scalar MSE loss.
    """
    B, C, H, W = x0.shape
    t_dim, CH = params["w_t"].shape
    assert C <= 128 and CH <= 128 and W + 3 <= 128

    WC = pl.next_power_of_2(W + 3)            # canvas row stride (power of 2 -> bit-op masks)
    PM = _round_up(H * WC + W + 1, 128)       # columns convolved per sample
    FL = _round_up(PM + 2 * WC + 2, 128)      # canvas width incl. 3x3 tap overhang

    # Tiny time-embedding GEMM + biases: left to XLA (it fuses with the reshapes below).
    temb = timestep_embedding(t.astype(jnp.float32), t_dim)
    tb = temb @ params["w_t"] + params["b_t"] + params["b1"]           # (B, CH)
    tb3 = tb.astype(jnp.float32)[:, :, None]                           # (B, CH, 1)

    # Weights hoisted out of the kernel: pre-reshaped, transposed (lane-dense conv
    # outputs) and pre-cast to the MXU dtype.  Tap/channel order matches k*C + c.
    w1t = params["w1"].reshape(9 * C, CH).T.astype(_MXU_DTYPE)         # (CH, 9*C)
    w2t = params["w2"].reshape(9 * CH, C).T.astype(_MXU_DTYPE)         # (C, 9*CH)
    b2c = params["b2"].reshape(C, 1).astype(jnp.float32)               # (C, 1)

    # Channel-first flattened-spatial inputs: pure reshape of NCHW, no padding in HBM.
    x0f = x0.astype(jnp.float32).reshape(B, C, H * W)
    nsf = noise.astype(jnp.float32).reshape(B, C, H * W)
    sa = sa.astype(jnp.float32)
    sb = sb.astype(jnp.float32)

    kernel = functools.partial(_ddpm_kernel, H=H, W=W, C=C, CH=CH, WC=WC, PM=PM)
    vmem = pltpu.MemorySpace.VMEM
    smem = pltpu.MemorySpace.SMEM

    sse = pl.pallas_call(
        kernel,
        out_shape=jax.ShapeDtypeStruct((1, 1), jnp.float32),
        grid=(B,),
        in_specs=[
            pl.BlockSpec(memory_space=smem),                      # sa (B,) scalars
            pl.BlockSpec(memory_space=smem),                      # sb (B,) scalars
            pl.BlockSpec((1, C, H * W), lambda b: (b, 0, 0)),     # x0, per-sample block
            pl.BlockSpec((1, C, H * W), lambda b: (b, 0, 0)),     # noise, per-sample block
            pl.BlockSpec((1, CH, 1), lambda b: (b, 0, 0)),        # time+conv1 bias
            pl.BlockSpec(memory_space=vmem),                      # w1t (CH, 9C) bf16
            pl.BlockSpec(memory_space=vmem),                      # w2t (C, 9CH) bf16
            pl.BlockSpec(memory_space=vmem),                      # b2  (C, 1)
        ],
        out_specs=pl.BlockSpec((1, 1), lambda b: (0, 0), memory_space=smem),
        scratch_shapes=[
            pltpu.VMEM((C, FL), jnp.float32),    # x_t canvas (flat spatial in lanes)
            pltpu.VMEM((C, FL), jnp.float32),    # noise canvas (for lane-dense MSE)
            pltpu.VMEM((CH, FL), _MXU_DTYPE),    # h1 canvas, stored as MXU operand
        ],
        compiler_params=pltpu.CompilerParams(
            dimension_semantics=("arbitrary",),   # SMEM loss accumulator across the grid
            vmem_limit_bytes=32 * 1024 * 1024,
        ),
        cost_estimate=pl.CostEstimate(
            flops=int(2 * B * PM * (CH * 9 * C + C * 9 * CH)),
            transcendentals=int(B * CH * PM),
            bytes_accessed=int(2 * B * C * H * W * 4 + 18 * C * CH * 2 + B * CH * 4 + 4),
        ),
    )(sa, sb, x0f, nsf, tb3, w1t, w2t, b2c)
    return sse[0, 0] / float(B * C * H * W)


# ---------------------------------------------------------------------------
# DiffusionModel.forward equivalent
# ---------------------------------------------------------------------------

def _prepare_batch(sched, x0_nchw, key):
    """Random t / noise + schedule gather (torch.randint / randn_like / extract())."""
    B = x0_nchw.shape[0]
    num_timesteps = sched["betas"].shape[0]
    k_t, k_n = jax.random.split(key)
    t = jax.random.randint(k_t, (B,), 0, num_timesteps)
    noise = jax.random.normal(k_n, x0_nchw.shape, x0_nchw.dtype)
    sa = sched["sqrt_alphas_cumprod"][t]
    sb = sched["sqrt_one_minus_alphas_cumprod"][t]
    return x0_nchw, noise, sa, sb, t


def diffusion_forward(params, sched, x0_nchw, key):
    """Single training step: random t, forward-diffuse, predict noise, MSE loss.

    # TODO(synk): the reference `ResNet(config)` U-Net / `DDPMConfig` are not defined in
    # the provided source; eps_theta here is a single deterministic ResNet-style block
    # (conv3x3 -> +time-bias -> SiLU -> conv3x3 -> +skip), as in the previous version.
    """
    x0, noise, sa, sb, t = _prepare_batch(sched, x0_nchw, key)
    return fused_ddpm_loss(params, x0, noise, sa, sb, t)


# ---------------------------------------------------------------------------
# Pure-JAX reference (used only for a correctness cross-check in __main__)
# ---------------------------------------------------------------------------

def _im2col_3x3(x):
    B, H, W, C = x.shape
    xp = jnp.pad(x, ((0, 0), (1, 1), (1, 1), (0, 0)))
    patches = [xp[:, i:i + H, j:j + W, :] for i in range(3) for j in range(3)]
    return jnp.stack(patches, axis=3).reshape(B * H * W, 9 * C)


def _reference_loss(params, x0_nchw, noise_nchw, sa, sb, t):
    B, C, H, W = x0_nchw.shape
    t_dim, CH = params["w_t"].shape
    x0 = jnp.transpose(x0_nchw, (0, 2, 3, 1))
    noise = jnp.transpose(noise_nchw, (0, 2, 3, 1))
    xt = sa[:, None, None, None] * x0 + sb[:, None, None, None] * noise
    tb = timestep_embedding(t.astype(jnp.float32), t_dim) @ params["w_t"] + params["b_t"]
    y1 = (_im2col_3x3(xt) @ params["w1"].reshape(9 * C, CH)).reshape(B, H, W, CH)
    v = y1 + (tb + params["b1"])[:, None, None, :]
    h1 = v * jax.nn.sigmoid(v)
    y2 = (_im2col_3x3(h1) @ params["w2"].reshape(9 * CH, C)).reshape(B, H, W, C)
    pred = y2 + params["b2"] + xt
    return jnp.mean((pred - noise) ** 2)


if __name__ == "__main__":
    key = jax.random.PRNGKey(0)
    k_x, k_p, k_fwd = jax.random.split(key, 3)

    B, C, H, W = 2, 4, 16, 16
    x0 = jax.random.normal(k_x, (B, C, H, W), jnp.float32)       # NCHW like PyTorch
    params = init_params(k_p, c_in=C, c_hid=32, t_dim=32)
    sched = make_schedule(num_timesteps=1000)

    # Module-equivalent training step (random t & noise inside, like forward()).
    loss = jax.jit(diffusion_forward)(params, sched, x0, k_fwd)
    loss = jax.block_until_ready(loss)
    assert jnp.isfinite(loss), "loss is not finite"

    # Cross-check the fused kernel against a pure-JAX reference on identical inputs
    # (loose tolerance: bf16 MXU operands vs f32 reference).
    batch = _prepare_batch(sched, x0, k_fwd)
    got = float(jax.block_until_ready(fused_ddpm_loss(params, *batch)))
    want = float(_reference_loss(params, *batch))
    assert abs(got - want) <= 0.1 * abs(want) + 1e-3, (got, want)

    print("KERNEL_OK")
</pallas_src>

<mosaic_0001>
module attributes {stable_mosaic.version = 11 : i64} {
  func.func @_ddpm_kernel(%arg0: i32, %arg1: memref<2xf32, #tpu.memory_space<smem>>, %arg2: memref<2xf32, #tpu.memory_space<smem>>, %arg3: memref<1x4x256xf32, #tpu.memory_space<vmem>>, %arg4: memref<1x4x256xf32, #tpu.memory_space<vmem>>, %arg5: memref<1x32x1xf32, #tpu.memory_space<vmem>>, %arg6: memref<32x36xbf16, #tpu.memory_space<vmem>>, %arg7: memref<4x288xbf16, #tpu.memory_space<vmem>>, %arg8: memref<4x1xf32, #tpu.memory_space<vmem>>, %arg9: memref<1x1xf32, #tpu.memory_space<smem>>, %arg10: memref<4x768xf32, #tpu.memory_space<vmem>>, %arg11: memref<4x768xf32, #tpu.memory_space<vmem>>, %arg12: memref<32x768xbf16, #tpu.memory_space<vmem>>) attributes {dimension_semantics = [#tpu.dimension_semantics<arbitrary>], iteration_bounds = array<i64: 2>, scalar_prefetch = 0 : i64, scratch_operands = 3 : i64, tpu.core_type = #tpu.core_type<tc>, window_params = [{transform_indices = @transform_0, window_bounds = array<i64: 2>}, {transform_indices = @transform_1, window_bounds = array<i64: 2>}, {transform_indices = @transform_2, window_bounds = array<i64: 1, 4, 256>}, {transform_indices = @transform_3, window_bounds = array<i64: 1, 4, 256>}, {transform_indices = @transform_4, window_bounds = array<i64: 1, 32, 1>}, {pipeline_mode = #tpu.pipeline_mode<synchronous>, transform_indices = @transform_5, window_bounds = array<i64: 32, 36>}, {pipeline_mode = #tpu.pipeline_mode<synchronous>, transform_indices = @transform_6, window_bounds = array<i64: 4, 288>}, {pipeline_mode = #tpu.pipeline_mode<synchronous>, transform_indices = @transform_7, window_bounds = array<i64: 4, 1>}, {transform_indices = @transform_8, window_bounds = array<i64: 1, 1>}]} {
    %c0_i32 = arith.constant 0 : i32
    %0 = arith.cmpi eq, %arg0, %c0_i32 : i32
    %1 = arith.extui %0 : i1 to i32
    %c0_i32_0 = arith.constant 0 : i32
    %2 = arith.cmpi ne, %1, %c0_i32_0 : i32
    scf.if %2 {
      %cst_118 = arith.constant 0.000000e+00 : f32
      %c0_119 = arith.constant 0 : index
      %c0_120 = arith.constant 0 : index
      %167 = memref.load %arg9[%c0_119, %c0_120] : memref<1x1xf32, #tpu.memory_space<smem>>
      memref.store %cst_118, %arg9[%c0_119, %c0_120] : memref<1x1xf32, #tpu.memory_space<smem>>
    } else {
    }
    %cst = arith.constant 0.000000e+00 : f32
    %3 = vector.broadcast %cst : f32 to vector<4x768xf32>
    %c0 = arith.constant 0 : index
    %c0_1 = arith.constant 0 : index
    %4 = vector.load %arg10[%c0, %c0_1] : memref<4x768xf32, #tpu.memory_space<vmem>>, vector<4x768xf32>
    tpu.vector_store %arg10[%c0, %c0_1], %3 {strides = array<i32>} : memref<4x768xf32, #tpu.memory_space<vmem>>, vector<4x768xf32>,
    %cst_2 = arith.constant 0.000000e+00 : f32
    %5 = vector.broadcast %cst_2 : f32 to vector<4x768xf32>
    %c0_3 = arith.constant 0 : index
    %c0_4 = arith.constant 0 : index
    %6 = vector.load %arg11[%c0_3, %c0_4] : memref<4x768xf32, #tpu.memory_space<vmem>>, vector<4x768xf32>
    tpu.vector_store %arg11[%c0_3, %c0_4], %5 {strides = array<i32>} : memref<4x768xf32, #tpu.memory_space<vmem>>, vector<4x768xf32>,
    %cst_5 = arith.constant 0.000000e+00 : bf16
    %7 = vector.broadcast %cst_5 : bf16 to vector<32x768xbf16>
    %c0_6 = arith.constant 0 : index
    %c0_7 = arith.constant 0 : index
    %8 = vector.load %arg12[%c0_6, %c0_7] : memref<32x768xbf16, #tpu.memory_space<vmem>>, vector<32x768xbf16>
    tpu.vector_store %arg12[%c0_6, %c0_7], %7 {strides = array<i32>} : memref<32x768xbf16, #tpu.memory_space<vmem>>, vector<32x768xbf16>,
    %9 = arith.index_cast %arg0 : i32 to index
    %10 = memref.load %arg1[%9] : memref<2xf32, #tpu.memory_space<smem>>
    %11 = arith.index_cast %arg0 : i32 to index
    %12 = memref.load %arg2[%11] : memref<2xf32, #tpu.memory_space<smem>>
    %c0_8 = arith.constant 0 : index
    %c0_9 = arith.constant 0 : index
    %c0_10 = arith.constant 0 : index
    %13 = vector.load %arg3[%c0_8, %c0_9, %c0_10] : memref<1x4x256xf32, #tpu.memory_space<vmem>>, vector<1x4x256xf32>
    %14 = vector.shape_cast %13 : vector<1x4x256xf32> to vector<4x256xf32>
    %c0_11 = arith.constant 0 : index
    %c0_12 = arith.constant 0 : index
    %c0_13 = arith.constant 0 : index
    %15 = vector.load %arg4[%c0_11, %c0_12, %c0_13] : memref<1x4x256xf32, #tpu.memory_space<vmem>>, vector<1x4x256xf32>
    %16 = vector.shape_cast %15 : vector<1x4x256xf32> to vector<4x256xf32>
    %17 = vector.broadcast %10 : f32 to vector<4x256xf32>
    %18 = arith.mulf %17, %14 : vector<4x256xf32>
    %19 = vector.broadcast %12 : f32 to vector<4x256xf32>
    %20 = arith.mulf %19, %16 : vector<4x256xf32>
    %21 = arith.addf %18, %20 : vector<4x256xf32>
    %22 = vector.extract_strided_slice %21 {offsets = [0, 0], sizes = [4, 16], strides = [1, 1]} : vector<4x256xf32> to vector<4x16xf32>
    %c0_14 = arith.constant 0 : index
    %c66 = arith.constant 66 : index
    %23 = vector.load %arg10[%c0_14, %c66] : memref<4x768xf32, #tpu.memory_space<vmem>>, vector<4x16xf32>
    tpu.vector_store %arg10[%c0_14, %c66], %22 {strides = array<i32>} : memref<4x768xf32, #tpu.memory_space<vmem>>, vector<4x16xf32>,
    %24 = vector.extract_strided_slice %16 {offsets = [0, 0], sizes = [4, 16], strides = [1, 1]} : vector<4x256xf32> to vector<4x16xf32>
    %c0_15 = arith.constant 0 : index
    %c66_16 = arith.constant 66 : index
    %25 = vector.load %arg11[%c0_15, %c66_16] : memref<4x768xf32, #tpu.memory_space<vmem>>, vector<4x16xf32>
    tpu.vector_store %arg11[%c0_15, %c66_16], %24 {strides = array<i32>} : memref<4x768xf32, #tpu.memory_space<vmem>>, vector<4x16xf32>,
    %26 = vector.extract_strided_slice %21 {offsets = [0, 16], sizes = [4, 16], strides = [1, 1]} : vector<4x256xf32> to vector<4x16xf32>
    %c0_17 = arith.constant 0 : index
    %c98 = arith.constant 98 : index
    %27 = vector.load %arg10[%c0_17, %c98] : memref<4x768xf32, #tpu.memory_space<vmem>>, vector<4x16xf32>
    tpu.vector_store %arg10[%c0_17, %c98], %26 {strides = array<i32>} : memref<4x768xf32, #tpu.memory_space<vmem>>, vector<4x16xf32>,
    %28 = vector.extract_strided_slice %16 {offsets = [0, 16], sizes = [4, 16], strides = [1, 1]} : vector<4x256xf32> to vector<4x16xf32>
    %c0_18 = arith.constant 0 : index
    %c98_19 = arith.constant 98 : index
    %29 = vector.load %arg11[%c0_18, %c98_19] : memref<4x768xf32, #tpu.memory_space<vmem>>, vector<4x16xf32>
    tpu.vector_store %arg11[%c0_18, %c98_19], %28 {strides = array<i32>} : memref<4x768xf32, #tpu.memory_space<vmem>>, vector<4x16xf32>,
    %30 = vector.extract_strided_slice %21 {offsets = [0, 32], sizes = [4, 16], strides = [1, 1]} : vector<4x256xf32> to vector<4x16xf32>
    %c0_20 = arith.constant 0 : index
    %c130 = arith.constant 130 : index
    %31 = vector.load %arg10[%c0_20, %c130] : memref<4x768xf32, #tpu.memory_space<vmem>>, vector<4x16xf32>
    tpu.vector_store %arg10[%c0_20, %c130], %30 {strides = array<i32>} : memref<4x768xf32, #tpu.memory_space<vmem>>, vector<4x16xf32>,
    %32 = vector.extract_strided_slice %16 {offsets = [0, 32], sizes = [4, 16], strides = [1, 1]} : vector<4x256xf32> to vector<4x16xf32>
    %c0_21 = arith.constant 0 : index
    %c130_22 = arith.constant 130 : index
    %33 = vector.load %arg11[%c0_21, %c130_22] : memref<4x768xf32, #tpu.memory_space<vmem>>, vector<4x16xf32>
    tpu.vector_store %arg11[%c0_21, %c130_22], %32 {strides = array<i32>} : memref<4x768xf32, #tpu.memory_space<vmem>>, vector<4x16xf32>,
    %34 = vector.extract_strided_slice %21 {offsets = [0, 48], sizes = [4, 16], strides = [1, 1]} : vector<4x256xf32> to vector<4x16xf32>
    %c0_23 = arith.constant 0 : index
    %c162 = arith.constant 162 : index
    %35 = vector.load %arg10[%c0_23, %c162] : memref<4x768xf32, #tpu.memory_space<vmem>>, vector<4x16xf32>
    tpu.vector_store %arg10[%c0_23, %c162], %34 {strides = array<i32>} : memref<4x768xf32, #tpu.memory_space<vmem>>, vector<4x16xf32>,
    %36 = vector.extract_strided_slice %16 {offsets = [0, 48], sizes = [4, 16], strides = [1, 1]} : vector<4x256xf32> to vector<4x16xf32>
    %c0_24 = arith.constant 0 : index
    %c162_25 = arith.constant 162 : index
    %37 = vector.load %arg11[%c0_24, %c162_25] : memref<4x768xf32, #tpu.memory_space<vmem>>, vector<4x16xf32>
    tpu.vector_store %arg11[%c0_24, %c162_25], %36 {strides = array<i32>} : memref<4x768xf32, #tpu.memory_space<vmem>>, vector<4x16xf32>,
    %38 = vector.extract_strided_slice %21 {offsets = [0, 64], sizes = [4, 16], strides = [1, 1]} : vector<4x256xf32> to vector<4x16xf32>
    %c0_26 = arith.constant 0 : index
    %c194 = arith.constant 194 : index
    %39 = vector.load %arg10[%c0_26, %c194] : memref<4x768xf32, #tpu.memory_space<vmem>>, vector<4x16xf32>
    tpu.vector_store %arg10[%c0_26, %c194], %38 {strides = array<i32>} : memref<4x768xf32, #tpu.memory_space<vmem>>, vector<4x16xf32>,
    %40 = vector.extract_strided_slice %16 {offsets = [0, 64], sizes = [4, 16], strides = [1, 1]} : vector<4x256xf32> to vector<4x16xf32>
    %c0_27 = arith.constant 0 : index
    %c194_28 = arith.constant 194 : index
    %41 = vector.load %arg11[%c0_27, %c194_28] : memref<4x768xf32, #tpu.memory_space<vmem>>, vector<4x16xf32>
    tpu.vector_store %arg11[%c0_27, %c194_28], %40 {strides = array<i32>} : memref<4x768xf32, #tpu.memory_space<vmem>>, vector<4x16xf32>,
    %42 = vector.extract_strided_slice %21 {offsets = [0, 80], sizes = [4, 16], strides = [1, 1]} : vector<4x256xf32> to vector<4x16xf32>
    %c0_29 = arith.constant 0 : index
    %c226 = arith.constant 226 : index
    %43 = vector.load %arg10[%c0_29, %c226] : memref<4x768xf32, #tpu.memory_space<vmem>>, vector<4x16xf32>
    tpu.vector_store %arg10[%c0_29, %c226], %42 {strides = array<i32>} : memref<4x768xf32, #tpu.memory_space<vmem>>, vector<4x16xf32>,
    %44 = vector.extract_strided_slice %16 {offsets = [0, 80], sizes = [4, 16], strides = [1, 1]} : vector<4x256xf32> to vector<4x16xf32>
    %c0_30 = arith.constant 0 : index
    %c226_31 = arith.constant 226 : index
    %45 = vector.load %arg11[%c0_30, %c226_31] : memref<4x768xf32, #tpu.memory_space<vmem>>, vector<4x16xf32>
    tpu.vector_store %arg11[%c0_30, %c226_31], %44 {strides = array<i32>} : memref<4x768xf32, #tpu.memory_space<vmem>>, vector<4x16xf32>,
    %46 = vector.extract_strided_slice %21 {offsets = [0, 96], sizes = [4, 16], strides = [1, 1]} : vector<4x256xf32> to vector<4x16xf32>
    %c0_32 = arith.constant 0 : index
    %c258 = arith.constant 258 : index
    %47 = vector.load %arg10[%c0_32, %c258] : memref<4x768xf32, #tpu.memory_space<vmem>>, vector<4x16xf32>
    tpu.vector_store %arg10[%c0_32, %c258], %46 {strides = array<i32>} : memref<4x768xf32, #tpu.memory_space<vmem>>, vector<4x16xf32>,
    %48 = vector.extract_strided_slice %16 {offsets = [0, 96], sizes = [4, 16], strides = [1, 1]} : vector<4x256xf32> to vector<4x16xf32>
    %c0_33 = arith.constant 0 : index
    %c258_34 = arith.constant 258 : index
    %49 = vector.load %arg11[%c0_33, %c258_34] : memref<4x768xf32, #tpu.memory_space<vmem>>, vector<4x16xf32>
    tpu.vector_store %arg11[%c0_33, %c258_34], %48 {strides = array<i32>} : memref<4x768xf32, #tpu.memory_space<vmem>>, vector<4x16xf32>,
    %50 = vector.extract_strided_slice %21 {offsets = [0, 112], sizes = [4, 16], strides = [1, 1]} : vector<4x256xf32> to vector<4x16xf32>
    %c0_35 = arith.constant 0 : index
    %c290 = arith.constant 290 : index
    %51 = vector.load %arg10[%c0_35, %c290] : memref<4x768xf32, #tpu.memory_space<vmem>>, vector<4x16xf32>
    tpu.vector_store %arg10[%c0_35, %c290], %50 {strides = array<i32>} : memref<4x768xf32, #tpu.memory_space<vmem>>, vector<4x16xf32>,
    %52 = vector.extract_strided_slice %16 {offsets = [0, 112], sizes = [4, 16], strides = [1, 1]} : vector<4x256xf32> to vector<4x16xf32>
    %c0_36 = arith.constant 0 : index
    %c290_37 = arith.constant 290 : index
    %53 = vector.load %arg11[%c0_36, %c290_37] : memref<4x768xf32, #tpu.memory_space<vmem>>, vector<4x16xf32>
    tpu.vector_store %arg11[%c0_36, %c290_37], %52 {strides = array<i32>} : memref<4x768xf32, #tpu.memory_space<vmem>>, vector<4x16xf32>,
    %54 = vector.extract_strided_slice %21 {offsets = [0, 128], sizes = [4, 16], strides = [1, 1]} : vector<4x256xf32> to vector<4x16xf32>
    %c0_38 = arith.constant 0 : index
    %c322 = arith.constant 322 : index
    %55 = vector.load %arg10[%c0_38, %c322] : memref<4x768xf32, #tpu.memory_space<vmem>>, vector<4x16xf32>
    tpu.vector_store %arg10[%c0_38, %c322], %54 {strides = array<i32>} : memref<4x768xf32, #tpu.memory_space<vmem>>, vector<4x16xf32>,
    %56 = vector.extract_strided_slice %16 {offsets = [0, 128], sizes = [4, 16], strides = [1, 1]} : vector<4x256xf32> to vector<4x16xf32>
    %c0_39 = arith.constant 0 : index
    %c322_40 = arith.constant 322 : index
    %57 = vector.load %arg11[%c0_39, %c322_40] : memref<4x768xf32, #tpu.memory_space<vmem>>, vector<4x16xf32>
    tpu.vector_store %arg11[%c0_39, %c322_40], %56 {strides = array<i32>} : memref<4x768xf32, #tpu.memory_space<vmem>>, vector<4x16xf32>,
    %58 = vector.extract_strided_slice %21 {offsets = [0, 144], sizes = [4, 16], strides = [1, 1]} : vector<4x256xf32> to vector<4x16xf32>
    %c0_41 = arith.constant 0 : index
    %c354 = arith.constant 354 : index
    %59 = vector.load %arg10[%c0_41, %c354] : memref<4x768xf32, #tpu.memory_space<vmem>>, vector<4x16xf32>
    tpu.vector_store %arg10[%c0_41, %c354], %58 {strides = array<i32>} : memref<4x768xf32, #tpu.memory_space<vmem>>, vector<4x16xf32>,
    %60 = vector.extract_strided_slice %16 {offsets = [0, 144], sizes = [4, 16], strides = [1, 1]} : vector<4x256xf32> to vector<4x16xf32>
    %c0_42 = arith.constant 0 : index
    %c354_43 = arith.constant 354 : index
    %61 = vector.load %arg11[%c0_42, %c354_43] : memref<4x768xf32, #tpu.memory_space<vmem>>, vector<4x16xf32>
    tpu.vector_store %arg11[%c0_42, %c354_43], %60 {strides = array<i32>} : memref<4x768xf32, #tpu.memory_space<vmem>>, vector<4x16xf32>,
    %62 = vector.extract_strided_slice %21 {offsets = [0, 160], sizes = [4, 16], strides = [1, 1]} : vector<4x256xf32> to vector<4x16xf32>
    %c0_44 = arith.constant 0 : index
    %c386 = arith.constant 386 : index
    %63 = vector.load %arg10[%c0_44, %c386] : memref<4x768xf32, #tpu.memory_space<vmem>>, vector<4x16xf32>
    tpu.vector_store %arg10[%c0_44, %c386], %62 {strides = array<i32>} : memref<4x768xf32, #tpu.memory_space<vmem>>, vector<4x16xf32>,
    %64 = vector.extract_strided_slice %16 {offsets = [0, 160], sizes = [4, 16], strides = [1, 1]} : vector<4x256xf32> to vector<4x16xf32>
    %c0_45 = arith.constant 0 : index
    %c386_46 = arith.constant 386 : index
    %65 = vector.load %arg11[%c0_45, %c386_46] : memref<4x768xf32, #tpu.memory_space<vmem>>, vector<4x16xf32>
    tpu.vector_store %arg11[%c0_45, %c386_46], %64 {strides = array<i32>} : memref<4x768xf32, #tpu.memory_space<vmem>>, vector<4x16xf32>,
    %66 = vector.extract_strided_slice %21 {offsets = [0, 176], sizes = [4, 16], strides = [1, 1]} : vector<4x256xf32> to vector<4x16xf32>
    %c0_47 = arith.constant 0 : index
    %c418 = arith.constant 418 : index
    %67 = vector.load %arg10[%c0_47, %c418] : memref<4x768xf32, #tpu.memory_space<vmem>>, vector<4x16xf32>
    tpu.vector_store %arg10[%c0_47, %c418], %66 {strides = array<i32>} : memref<4x768xf32, #tpu.memory_space<vmem>>, vector<4x16xf32>,
    %68 = vector.extract_strided_slice %16 {offsets = [0, 176], sizes = [4, 16], strides = [1, 1]} : vector<4x256xf32> to vector<4x16xf32>
    %c0_48 = arith.constant 0 : index
    %c418_49 = arith.constant 418 : index
    %69 = vector.load %arg11[%c0_48, %c418_49] : memref<4x768xf32, #tpu.memory_space<vmem>>, vector<4x16xf32>
    tpu.vector_store %arg11[%c0_48, %c418_49], %68 {strides = array<i32>} : memref<4x768xf32, #tpu.memory_space<vmem>>, vector<4x16xf32>,
    %70 = vector.extract_strided_slice %21 {offsets = [0, 192], sizes = [4, 16], strides = [1, 1]} : vector<4x256xf32> to vector<4x16xf32>
    %c0_50 = arith.constant 0 : index
    %c450 = arith.constant 450 : index
    %71 = vector.load %arg10[%c0_50, %c450] : memref<4x768xf32, #tpu.memory_space<vmem>>, vector<4x16xf32>
    tpu.vector_store %arg10[%c0_50, %c450], %70 {strides = array<i32>} : memref<4x768xf32, #tpu.memory_space<vmem>>, vector<4x16xf32>,
    %72 = vector.extract_strided_slice %16 {offsets = [0, 192], sizes = [4, 16], strides = [1, 1]} : vector<4x256xf32> to vector<4x16xf32>
    %c0_51 = arith.constant 0 : index
    %c450_52 = arith.constant 450 : index
    %73 = vector.load %arg11[%c0_51, %c450_52] : memref<4x768xf32, #tpu.memory_space<vmem>>, vector<4x16xf32>
    tpu.vector_store %arg11[%c0_51, %c450_52], %72 {strides = array<i32>} : memref<4x768xf32, #tpu.memory_space<vmem>>, vector<4x16xf32>,
    %74 = vector.extract_strided_slice %21 {offsets = [0, 208], sizes = [4, 16], strides = [1, 1]} : vector<4x256xf32> to vector<4x16xf32>
    %c0_53 = arith.constant 0 : index
    %c482 = arith.constant 482 : index
    %75 = vector.load %arg10[%c0_53, %c482] : memref<4x768xf32, #tpu.memory_space<vmem>>, vector<4x16xf32>
    tpu.vector_store %arg10[%c0_53, %c482], %74 {strides = array<i32>} : memref<4x768xf32, #tpu.memory_space<vmem>>, vector<4x16xf32>,
    %76 = vector.extract_strided_slice %16 {offsets = [0, 208], sizes = [4, 16], strides = [1, 1]} : vector<4x256xf32> to vector<4x16xf32>
    %c0_54 = arith.constant 0 : index
    %c482_55 = arith.constant 482 : index
    %77 = vector.load %arg11[%c0_54, %c482_55] : memref<4x768xf32, #tpu.memory_space<vmem>>, vector<4x16xf32>
    tpu.vector_store %arg11[%c0_54, %c482_55], %76 {strides = array<i32>} : memref<4x768xf32, #tpu.memory_space<vmem>>, vector<4x16xf32>,
    %78 = vector.extract_strided_slice %21 {offsets = [0, 224], sizes = [4, 16], strides = [1, 1]} : vector<4x256xf32> to vector<4x16xf32>
    %c0_56 = arith.constant 0 : index
    %c514 = arith.constant 514 : index
    %79 = vector.load %arg10[%c0_56, %c514] : memref<4x768xf32, #tpu.memory_space<vmem>>, vector<4x16xf32>
    tpu.vector_store %arg10[%c0_56, %c514], %78 {strides = array<i32>} : memref<4x768xf32, #tpu.memory_space<vmem>>, vector<4x16xf32>,
    %80 = vector.extract_strided_slice %16 {offsets = [0, 224], sizes = [4, 16], strides = [1, 1]} : vector<4x256xf32> to vector<4x16xf32>
    %c0_57 = arith.constant 0 : index
    %c514_58 = arith.constant 514 : index
    %81 = vector.load %arg11[%c0_57, %c514_58] : memref<4x768xf32, #tpu.memory_space<vmem>>, vector<4x16xf32>
    tpu.vector_store %arg11[%c0_57, %c514_58], %80 {strides = array<i32>} : memref<4x768xf32, #tpu.memory_space<vmem>>, vector<4x16xf32>,
    %82 = vector.extract_strided_slice %21 {offsets = [0, 240], sizes = [4, 16], strides = [1, 1]} : vector<4x256xf32> to vector<4x16xf32>
    %c0_59 = arith.constant 0 : index
    %c546 = arith.constant 546 : index
    %83 = vector.load %arg10[%c0_59, %c546] : memref<4x768xf32, #tpu.memory_space<vmem>>, vector<4x16xf32>
    tpu.vector_store %arg10[%c0_59, %c546], %82 {strides = array<i32>} : memref<4x768xf32, #tpu.memory_space<vmem>>, vector<4x16xf32>,
    %84 = vector.extract_strided_slice %16 {offsets = [0, 240], sizes = [4, 16], strides = [1, 1]} : vector<4x256xf32> to vector<4x16xf32>
    %c0_60 = arith.constant 0 : index
    %c546_61 = arith.constant 546 : index
    %85 = vector.load %arg11[%c0_60, %c546_61] : memref<4x768xf32, #tpu.memory_space<vmem>>, vector<4x16xf32>
    tpu.vector_store %arg11[%c0_60, %c546_61], %84 {strides = array<i32>} : memref<4x768xf32, #tpu.memory_space<vmem>>, vector<4x16xf32>,
    %86 = tpu.iota {dimensions = array<i32: 1>} : vector<1x640xi32>
    %c5_i32 = arith.constant 5 : i32
    %87 = vector.broadcast %c5_i32 : i32 to vector<1x640xi32>
    %88 = arith.shrsi %86, %87 : vector<1x640xi32>
    %c31_i32 = arith.constant 31 : i32
    %89 = vector.broadcast %c31_i32 : i32 to vector<1x640xi32>
    %90 = arith.andi %86, %89 : vector<1x640xi32>
    %c1_i32 = arith.constant 1 : i32
    %91 = vector.broadcast %c1_i32 : i32 to vector<1x640xi32>
    %92 = arith.cmpi sge, %88, %91 : vector<1x640xi32>
    %c16_i32 = arith.constant 16 : i32
    %93 = vector.broadcast %c16_i32 : i32 to vector<1x640xi32>
    %94 = arith.cmpi sle, %88, %93 : vector<1x640xi32>
    %95 = arith.andi %92, %94 : vector<1x640xi1>
    %c1_i32_62 = arith.constant 1 : i32
    %96 = vector.broadcast %c1_i32_62 : i32 to vector<1x640xi32>
    %97 = arith.cmpi sge, %90, %96 : vector<1x640xi32>
    %98 = arith.andi %95, %97 : vector<1x640xi1>
    %c16_i32_63 = arith.constant 16 : i32
    %99 = vector.broadcast %c16_i32_63 : i32 to vector<1x640xi32>
    %100 = arith.cmpi sle, %90, %99 : vector<1x640xi32>
    %101 = arith.andi %98, %100 : vector<1x640xi1>
    %102 = arith.extui %101 : vector<1x640xi1> to vector<1x640xi32>
    %103 = arith.sitofp %102 : vector<1x640xi32> to vector<1x640xf32>
    %c16_i32_64 = arith.constant 16 : i32
    %104 = vector.broadcast %c16_i32_64 : i32 to vector<1x640xi32>
    %105 = arith.cmpi slt, %88, %104 : vector<1x640xi32>
    %c16_i32_65 = arith.constant 16 : i32
    %106 = vector.broadcast %c16_i32_65 : i32 to vector<1x640xi32>
    %107 = arith.cmpi slt, %90, %106 : vector<1x640xi32>
    %108 = arith.andi %105, %107 : vector<1x640xi1>
    %109 = arith.extui %108 : vector<1x640xi1> to vector<1x640xi32>
    %110 = arith.sitofp %109 : vector<1x640xi32> to vector<1x640xf32>
    %c0_66 = arith.constant 0 : index
    %c0_67 = arith.constant 0 : index
    %111 = vector.load %arg10[%c0_66, %c0_67] : memref<4x768xf32, #tpu.memory_space<vmem>>, vector<4x640xf32>
    %c0_68 = arith.constant 0 : index
    %c1 = arith.constant 1 : index
    %112 = vector.load %arg10[%c0_68, %c1] : memref<4x768xf32, #tpu.memory_space<vmem>>, vector<4x640xf32>
    %c0_69 = arith.constant 0 : index
    %c2 = arith.constant 2 : index
    %113 = vector.load %arg10[%c0_69, %c2] : memref<4x768xf32, #tpu.memory_space<vmem>>, vector<4x640xf32>
    %c0_70 = arith.constant 0 : index
    %c32 = arith.constant 32 : index
    %114 = vector.load %arg10[%c0_70, %c32] : memref<4x768xf32, #tpu.memory_space<vmem>>, vector<4x640xf32>
    %c0_71 = arith.constant 0 : index
    %c33 = arith.constant 33 : index
    %115 = vector.load %arg10[%c0_71, %c33] : memref<4x768xf32, #tpu.memory_space<vmem>>, vector<4x640xf32>
    %c0_72 = arith.constant 0 : index
    %c34 = arith.constant 34 : index
    %116 = vector.load %arg10[%c0_72, %c34] : memref<4x768xf32, #tpu.memory_space<vmem>>, vector<4x640xf32>
    %c0_73 = arith.constant 0 : index
    %c64 = arith.constant 64 : index
    %117 = vector.load %arg10[%c0_73, %c64] : memref<4x768xf32, #tpu.memory_space<vmem>>, vector<4x640xf32>
    %c0_74 = arith.constant 0 : index
    %c65 = arith.constant 65 : index
    %118 = vector.load %arg10[%c0_74, %c65] : memref<4x768xf32, #tpu.memory_space<vmem>>, vector<4x640xf32>
    %c0_75 = arith.constant 0 : index
    %c66_76 = arith.constant 66 : index
    %119 = vector.load %arg10[%c0_75, %c66_76] : memref<4x768xf32, #tpu.memory_space<vmem>>, vector<4x640xf32>
    %120 = tpu.concatenate %111, %112, %113, %114, %115, %116, %117, %118, %119 in 0 : vector<4x640xf32>, vector<4x640xf32>, vector<4x640xf32>, vector<4x640xf32>, vector<4x640xf32>, vector<4x640xf32>, vector<4x640xf32>, vector<4x640xf32>, vector<4x640xf32> -> vector<36x640xf32>
    %121 = arith.truncf %120 : vector<36x640xf32> to vector<36x640xbf16>
    %c0_77 = arith.constant 0 : index
    %c0_78 = arith.constant 0 : index
    %122 = vector.load %arg6[%c0_77, %c0_78] : memref<32x36xbf16, #tpu.memory_space<vmem>>, vector<32x36xbf16>
    %cst_79 = arith.constant dense<0.000000e+00> : vector<32x640xf32>
    %123 = tpu.matmul %122, %121, %cst_79 {dimension_numbers = #tpu.dot_dimension_numbers<[1], [0], [0], [1], [0, 0, 1, 1], [], []>} : vector<32x36xbf16>, vector<36x640xbf16>, vector<32x640xf32> -> vector<32x640xf32>
    %c0_80 = arith.constant 0 : index
    %c0_81 = arith.constant 0 : index
    %c0_82 = arith.constant 0 : index
    %124 = vector.load %arg5[%c0_80, %c0_81, %c0_82] : memref<1x32x1xf32, #tpu.memory_space<vmem>>, vector<1x32x1xf32>
    %125 = vector.shape_cast %124 : vector<1x32x1xf32> to vector<32x1xf32>
    %126 = vector.broadcast %125 : vector<32x1xf32> to vector<32x640xf32>
    %127 = arith.addf %123, %126 : vector<32x640xf32>
    %128 = arith.negf %127 : vector<32x640xf32>
    %129 = math.exp %128 : vector<32x640xf32>
    %cst_83 = arith.constant 1.000000e+00 : f32
    %130 = vector.broadcast %cst_83 : f32 to vector<32x640xf32>
    %131 = arith.addf %130, %129 : vector<32x640xf32>
    %132 = arith.divf %130, %131 : vector<32x640xf32>
    %133 = arith.mulf %127, %132 : vector<32x640xf32>
    %134 = vector.broadcast %103 : vector<1x640xf32> to vector<32x640xf32>
    %135 = arith.mulf %133, %134 : vector<32x640xf32>
    %136 = arith.truncf %135 : vector<32x640xf32> to vector<32x640xbf16>
    %c0_84 = arith.constant 0 : index
    %c0_85 = arith.constant 0 : index
    %137 = vector.load %arg12[%c0_84, %c0_85] : memref<32x768xbf16, #tpu.memory_space<vmem>>, vector<32x640xbf16>
    tpu.vector_store %arg12[%c0_84, %c0_85], %136 {strides = array<i32>} : memref<32x768xbf16, #tpu.memory_space<vmem>>, vector<32x640xbf16>,
    %c0_86 = arith.constant 0 : index
    %c0_87 = arith.constant 0 : index
    %138 = vector.load %arg12[%c0_86, %c0_87] : memref<32x768xbf16, #tpu.memory_space<vmem>>, vector<32x640xbf16>
    %c0_88 = arith.constant 0 : index
    %c1_89 = arith.constant 1 : index
    %139 = vector.load %arg12[%c0_88, %c1_89] : memref<32x768xbf16, #tpu.memory_space<vmem>>, vector<32x640xbf16>
    %c0_90 = arith.constant 0 : index
    %c2_91 = arith.constant 2 : index
    %140 = vector.load %arg12[%c0_90, %c2_91] : memref<32x768xbf16, #tpu.memory_space<vmem>>, vector<32x640xbf16>
    %c0_92 = arith.constant 0 : index
    %c32_93 = arith.constant 32 : index
    %141 = vector.load %arg12[%c0_92, %c32_93] : memref<32x768xbf16, #tpu.memory_space<vmem>>, vector<32x640xbf16>
    %c0_94 = arith.constant 0 : index
    %c33_95 = arith.constant 33 : index
    %142 = vector.load %arg12[%c0_94, %c33_95] : memref<32x768xbf16, #tpu.memory_space<vmem>>, vector<32x640xbf16>
    %c0_96 = arith.constant 0 : index
    %c34_97 = arith.constant 34 : index
    %143 = vector.load %arg12[%c0_96, %c34_97] : memref<32x768xbf16, #tpu.memory_space<vmem>>, vector<32x640xbf16>
    %c0_98 = arith.constant 0 : index
    %c64_99 = arith.constant 64 : index
    %144 = vector.load %arg12[%c0_98, %c64_99] : memref<32x768xbf16, #tpu.memory_space<vmem>>, vector<32x640xbf16>
    %c0_100 = arith.constant 0 : index
    %c65_101 = arith.constant 65 : index
    %145 = vector.load %arg12[%c0_100, %c65_101] : memref<32x768xbf16, #tpu.memory_space<vmem>>, vector<32x640xbf16>
    %c0_102 = arith.constant 0 : index
    %c66_103 = arith.constant 66 : index
    %146 = vector.load %arg12[%c0_102, %c66_103] : memref<32x768xbf16, #tpu.memory_space<vmem>>, vector<32x640xbf16>
    %147 = tpu.concatenate %138, %139, %140, %141, %142, %143, %144, %145, %146 in 0 : vector<32x640xbf16>, vector<32x640xbf16>, vector<32x640xbf16>, vector<32x640xbf16>, vector<32x640xbf16>, vector<32x640xbf16>, vector<32x640xbf16>, vector<32x640xbf16>, vector<32x640xbf16> -> vector<288x640xbf16>
    %c0_104 = arith.constant 0 : index
    %c0_105 = arith.constant 0 : index
    %148 = vector.load %arg7[%c0_104, %c0_105] : memref<4x288xbf16, #tpu.memory_space<vmem>>, vector<4x288xbf16>
    %cst_106 = arith.constant dense<0.000000e+00> : vector<4x640xf32>
    %149 = tpu.matmul %148, %147, %cst_106 {dimension_numbers = #tpu.dot_dimension_numbers<[1], [0], [0], [1], [0, 0, 1, 1], [], []>} : vector<4x288xbf16>, vector<288x640xbf16>, vector<4x640xf32> -> vector<4x640xf32>
    %c0_107 = arith.constant 0 : index
    %c0_108 = arith.constant 0 : index
    %150 = vector.load %arg8[%c0_107, %c0_108] : memref<4x1xf32, #tpu.memory_space<vmem>>, vector<4x1xf32>
    %151 = vector.broadcast %150 : vector<4x1xf32> to vector<4x640xf32>
    %152 = arith.addf %149, %151 : vector<4x640xf32>
    %c0_109 = arith.constant 0 : index
    %c66_110 = arith.constant 66 : index
    %153 = vector.load %arg10[%c0_109, %c66_110] : memref<4x768xf32, #tpu.memory_space<vmem>>, vector<4x640xf32>
    %154 = arith.addf %152, %153 : vector<4x640xf32>
    %c0_111 = arith.constant 0 : index
    %c66_112 = arith.constant 66 : index
    %155 = vector.load %arg11[%c0_111, %c66_112] : memref<4x768xf32, #tpu.memory_space<vmem>>, vector<4x640xf32>
    %156 = arith.subf %154, %155 : vector<4x640xf32>
    %157 = vector.broadcast %110 : vector<1x640xf32> to vector<4x640xf32>
    %158 = arith.mulf %156, %157 : vector<4x640xf32>
    %c0_113 = arith.constant 0 : index
    %c0_114 = arith.constant 0 : index
    %159 = memref.load %arg9[%c0_113, %c0_114] : memref<1x1xf32, #tpu.memory_space<smem>>
    %160 = arith.mulf %158, %158 : vector<4x640xf32>
    %161 = vector.shape_cast %160 : vector<4x640xf32> to vector<1x4x640xf32>
    %cst_115 = arith.constant dense<0.000000e+00> : vector<1xf32>
    %162 = vector.multi_reduction <add>, %161, %cst_115 [1, 2] : vector<1x4x640xf32> to vector<1xf32>
    %163 = vector.shape_cast %162 : vector<1xf32> to vector<1x1x1xf32>
    %164 = vector.extract %163[0, 0, 0] : f32 from vector<1x1x1xf32>
    %165 = arith.addf %159, %164 : f32
    %c0_116 = arith.constant 0 : index
    %c0_117 = arith.constant 0 : index
    %166 = memref.load %arg9[%c0_116, %c0_117] : memref<1x1xf32, #tpu.memory_space<smem>>
    memref.store %165, %arg9[%c0_116, %c0_117] : memref<1x1xf32, #tpu.memory_space<smem>>
    return
  }
  func.func @transform_0(%arg0: i32) -> i32 {
    %c0_i32 = arith.constant 0 : i32
    %c0_i32_0 = arith.constant 0 : i32
    return %c0_i32 : i32
  }
  func.func @transform_1(%arg0: i32) -> i32 {
    %c0_i32 = arith.constant 0 : i32
    %c0_i32_0 = arith.constant 0 : i32
    return %c0_i32 : i32
  }
  func.func @transform_2(%arg0: i32) -> (i32, i32, i32) {
    %c0_i32 = arith.constant 0 : i32
    %c0_i32_0 = arith.constant 0 : i32
    %c0_i32_1 = arith.constant 0 : i32
    return %arg0, %c0_i32, %c0_i32_0 : i32, i32, i32
  }
  func.func @transform_3(%arg0: i32) -> (i32, i32, i32) {
    %c0_i32 = arith.constant 0 : i32
    %c0_i32_0 = arith.constant 0 : i32
    %c0_i32_1 = arith.constant 0 : i32
    return %arg0, %c0_i32, %c0_i32_0 : i32, i32, i32
  }
  func.func @transform_4(%arg0: i32) -> (i32, i32, i32) {
    %c0_i32 = arith.constant 0 : i32
    %c0_i32_0 = arith.constant 0 : i32
    %c0_i32_1 = arith.constant 0 : i32
    return %arg0, %c0_i32, %c0_i32_0 : i32, i32, i32
  }
  func.func @transform_5(%arg0: i32) -> (i32, i32) {
    %c0_i32 = arith.constant 0 : i32
    %c0_i32_0 = arith.constant 0 : i32
    %c0_i32_1 = arith.constant 0 : i32
    return %c0_i32, %c0_i32_0 : i32, i32
  }
  func.func @transform_6(%arg0: i32) -> (i32, i32) {
    %c0_i32 = arith.constant 0 : i32
    %c0_i32_0 = arith.constant 0 : i32
    %c0_i32_1 = arith.constant 0 : i32
    return %c0_i32, %c0_i32_0 : i32, i32
  }
  func.func @transform_7(%arg0: i32) -> (i32, i32) {
    %c0_i32 = arith.constant 0 : i32
    %c0_i32_0 = arith.constant 0 : i32
    %c0_i32_1 = arith.constant 0 : i32
    return %c0_i32, %c0_i32_0 : i32, i32
  }
  func.func @transform_8(%arg0: i32) -> (i32, i32) {
    %c0_i32 = arith.constant 0 : i32
    %c0_i32_0 = arith.constant 0 : i32
    %c0_i32_1 = arith.constant 0 : i32
    return %c0_i32, %c0_i32_0 : i32, i32
  }
}

</mosaic_0001>

<llo_original>
// kernel: diffusion_forward.1
$region0: #{diffusion_forward.1}
  #allocation0 [shape = 'u32[]', space=smem, size = 0x4, offset = 0x4, fixed_abs, tag = 'smem constant byte address 0x4 - core index']
  #allocation1 [shape = 'u32[144,128]{1,0:T(1,128)}', space=vmem, size = 0x12000, scoped, tag = 'internal scratch']
  #allocation2 [shape = 'f32[4,768]{1,0:T(4,128)}', space=vmem, size = 0x3000, scoped, tag = 'scratch operand']
  #allocation3 [shape = 'f32[4,768]{1,0:T(4,128)}', space=vmem, size = 0x3000, scoped, tag = 'scratch operand']
  #allocation4 [shape = 'bf16[32,768]{1,0:T(16,128)(2,1)}', space=vmem, size = 0xc000, scoped, tag = 'scratch operand']
  %s0 = inlined_call_operand.vmem [shape: f32[2], index: 0, kind: input, shape index: {}]
  %s1 = inlined_call_operand.vmem [shape: f32[2], index: 1, kind: input, shape index: {}]
  %s2 = inlined_call_operand.vmem [shape: f32[2,4,256], index: 2, kind: input, shape index: {}]
  %s3 = inlined_call_operand.vmem [shape: f32[2,4,256], index: 3, kind: input, shape index: {}]
  %s4 = inlined_call_operand.vmem [shape: f32[2,32,1], index: 4, kind: input, shape index: {}]
  %s5 = inlined_call_operand.vmem [shape: bf16[32,36], index: 5, kind: input, shape index: {}]
  %s6 = inlined_call_operand.vmem [shape: bf16[4,288], index: 6, kind: input, shape index: {}]
  %s7 = inlined_call_operand.vmem [shape: f32[4,1], index: 7, kind: input, shape index: {}]
  %s8 = inlined_call_operand.hbm [shape: f32[1,1], index: 8, kind: output, shape index: {}]
  %s9 = sld [smem:[#allocation0]]
  $region77: #{diffusion_forward.1} parent=0
    _
  %s11 = ssub.s32 1, %s9
  %s12 = scalar_select 0, %s11, %s9
  $region1: #{diffusion_forward.1} parent=0
    #allocation5 [shape = 'u8[512]{0}', space=smem, size = 0x200, scoped, tag = 'input window, operand 0, single buffered']
    #allocation6 [shape = 's32[2]{0}', space=sflag, size = 0x8, scoped, tag = 'scoped memory for diffusion_forward.1']
    #allocation7 [shape = 's32[2]{0}', space=sflag, size = 0x8, scoped, tag = 'scoped memory for diffusion_forward.1']
    #allocation8 [shape = 'u8[512]{0}', space=smem, size = 0x200, scoped, tag = 'input window, operand 1, single buffered']
    #allocation9 [shape = 's32[1]{0}', space=sflag, size = 0x4, scoped, tag = 'scoped memory for diffusion_forward.1']
    #allocation10 [shape = 'u8[512]{0}', space=smem, size = 0x200, scoped, tag = 'output window, operand 0, single buffered']
    %13 = vsyncpa [#allocation7], 0
    %14 = vsyncpa [#allocation9], 0
    %15 = vsyncpa [#allocation6], 0
    loop: start=0, step=1, limit=4
    $region2: #{diffusion_forward.1} parent=1 // loop_pre_header
      _
    $region3: #{diffusion_forward.1} parent=1 // loop_header
      %s17 = sphi 0, %s21
      %p18 = scmp.ge.s32.totalorder %s17, 4
      %s25 = sphi 0, %s25
      %s27 = sphi 0, %s25
      %s28 = sphi 0, %s27
      %s42 = sphi 0, %s28
      %s46 = sphi 0, %s46
      %s48 = sphi 0, %s46
      %s49 = sphi 0, %s48
      %s63 = sphi 0, %s49
      %s69 = sphi 0, %s71
      %s72 = sphi 0, %s69
      %s73 = sphi 0, %s72
      %s89 = sphi 0, %s73
      %s95 = sphi 0, %s97
      %s98 = sphi 0, %s95
      %s99 = sphi 0, %s98
      %s115 = sphi 0, %s99
      %s121 = sphi 0, %s123
      %s124 = sphi 0, %s121
      %s125 = sphi 0, %s124
      %s141 = sphi 0, %s125
      %s145 = sphi 0, %s145
      %s147 = sphi 0, %s145
      %s148 = sphi 0, %s147
      %s162 = sphi 0, %s148
      %s166 = sphi 0, %s166
      %s168 = sphi 0, %s166
      %s169 = sphi 0, %s168
      %s183 = sphi 0, %s169
      %s187 = sphi 0, %s187
      %s189 = sphi 0, %s187
      %s190 = sphi 0, %s189
      %s204 = sphi 0, %s190
      %s208 = sphi 0, %s208
      %s210 = sphi 0, %s208
      %s211 = sphi 0, %s210
      %s225 = sphi 0, %s211
    $region4: #{diffusion_forward.1} parent=1 // loop_header_branch
      %20 = sbr.rel (%p18) target = $region8
    $region5: #{diffusion_forward.1} parent=1 // loop_body
      %s22 = ssub.s32 %s17, 1
      %s23 = ssub.s32 %s17, 2
      %s24 = sadd.s32 %s17, 1
      %s26 = sadd.s32 %s25, 1
      %p29 = scmp.eq.s32.totalorder %s17, 1
      %p30 = scmp.ne.s32.totalorder %s25, %s27
      %p31 = scmp.eq.s32.totalorder %s17, 0
      %p32 = por %p30, %p31
      %p33 = scmp.ne.s32.totalorder %s25, %s27
      %p34 = scmp.eq.s32.totalorder %s22, 1
      %p35 = por %p33, %p34
      %p36 = scmp.ne.s32.totalorder %s27, %s28
      %p37 = scmp.eq.s32.totalorder %s22, 0
      %p38 = por %p36, %p37
      %p39 = scmp.ne.s32.totalorder %s27, %s28
      %p40 = scmp.eq.s32.totalorder %s23, 1
      %p41 = por %p39, %p40
      %p43 = scmp.ne.s32.totalorder %s28, %s42
      %p44 = scmp.eq.s32.totalorder %s23, 0
      %p45 = por %p43, %p44
      %s47 = sadd.s32 %s46, 1
      %p50 = scmp.eq.s32.totalorder %s17, 1
      %p51 = scmp.ne.s32.totalorder %s46, %s48
      %p52 = scmp.eq.s32.totalorder %s17, 0
      %p53 = por %p51, %p52
      %p54 = scmp.ne.s32.totalorder %s46, %s48
      %p55 = scmp.eq.s32.totalorder %s22, 1
      %p56 = por %p54, %p55
      %p57 = scmp.ne.s32.totalorder %s48, %s49
      %p58 = scmp.eq.s32.totalorder %s22, 0
      %p59 = por %p57, %p58
      %p60 = scmp.ne.s32.totalorder %s48, %s49
      %p61 = scmp.eq.s32.totalorder %s23, 1
      %p62 = por %p60, %p61
      %p64 = scmp.ne.s32.totalorder %s49, %s63
      %p65 = scmp.eq.s32.totalorder %s23, 0
      %p66 = por %p64, %p65
      %s67 = ssub.s32 %s17, %s24
      %p68 = scmp.eq.s32.totalorder %s67, 0
      %s70 = sadd.s32 %s69, 1
      %s71 = scalar_select %p68, %s69, %s70
      %p74 = pneg %p68
      %p75 = scmp.eq.s32.totalorder %s17, 1
      %p76 = por %p74, %p75
      %p77 = scmp.ne.s32.totalorder %s69, %s72
      %p78 = scmp.eq.s32.totalorder %s17, 0
      %p79 = por %p77, %p78
      %p80 = scmp.ne.s32.totalorder %s69, %s72
      %p81 = scmp.eq.s32.totalorder %s22, 1
      %p82 = por %p80, %p81
      %p83 = scmp.ne.s32.totalorder %s72, %s73
      %p84 = scmp.eq.s32.totalorder %s22, 0
      %p85 = por %p83, %p84
      %p86 = scmp.ne.s32.totalorder %s72, %s73
      %p87 = scmp.eq.s32.totalorder %s23, 1
      %p88 = por %p86, %p87
      %p90 = scmp.ne.s32.totalorder %s73, %s89
      %p91 = scmp.eq.s32.totalorder %s23, 0
      %p92 = por %p90, %p91
      %s93 = ssub.s32 %s17, %s24
      %p94 = scmp.eq.s32.totalorder %s93, 0
      %s96 = sadd.s32 %s95, 1
      %s97 = scalar_select %p94, %s95, %s96
      %p100 = pneg %p94
      %p101 = scmp.eq.s32.totalorder %s17, 1
      %p102 = por %p100, %p101
      %p103 = scmp.ne.s32.totalorder %s95, %s98
      %p104 = scmp.eq.s32.totalorder %s17, 0
      %p105 = por %p103, %p104
      %p106 = scmp.ne.s32.totalorder %s95, %s98
      %p107 = scmp.eq.s32.totalorder %s22, 1
      %p108 = por %p106, %p107
      %p109 = scmp.ne.s32.totalorder %s98, %s99
      %p110 = scmp.eq.s32.totalorder %s22, 0
      %p111 = por %p109, %p110
      %p112 = scmp.ne.s32.totalorder %s98, %s99
      %p113 = scmp.eq.s32.totalorder %s23, 1
      %p114 = por %p112, %p113
      %p116 = scmp.ne.s32.totalorder %s99, %s115
      %p117 = scmp.eq.s32.totalorder %s23, 0
      %p118 = por %p116, %p117
      %s119 = ssub.s32 %s17, %s24
      %p120 = scmp.eq.s32.totalorder %s119, 0
      %s122 = sadd.s32 %s121, 1
      %s123 = scalar_select %p120, %s121, %s122
      %p126 = pneg %p120
      %p127 = scmp.eq.s32.totalorder %s17, 1
      %p128 = por %p126, %p127
      %p129 = scmp.ne.s32.totalorder %s121, %s124
      %p130 = scmp.eq.s32.totalorder %s17, 0
      %p131 = por %p129, %p130
      %p132 = scmp.ne.s32.totalorder %s121, %s124
      %p133 = scmp.eq.s32.totalorder %s22, 1
      %p134 = por %p132, %p133
      %p135 = scmp.ne.s32.totalorder %s124, %s125
      %p136 = scmp.eq.s32.totalorder %s22, 0
      %p137 = por %p135, %p136
      %p138 = scmp.ne.s32.totalorder %s124, %s125
      %p139 = scmp.eq.s32.totalorder %s23, 1
      %p140 = por %p138, %p139
      %p142 = scmp.ne.s32.totalorder %s125, %s141
      %p143 = scmp.eq.s32.totalorder %s23, 0
      %p144 = por %p142, %p143
      %s146 = sadd.s32 %s145, 1
      %p149 = scmp.eq.s32.totalorder %s17, 1
      %p150 = scmp.ne.s32.totalorder %s145, %s147
      %p151 = scmp.eq.s32.totalorder %s17, 0
      %p152 = por %p150, %p151
      %p153 = scmp.ne.s32.totalorder %s145, %s147
      %p154 = scmp.eq.s32.totalorder %s22, 1
      %p155 = por %p153, %p154
      %p156 = scmp.ne.s32.totalorder %s147, %s148
      %p157 = scmp.eq.s32.totalorder %s22, 0
      %p158 = por %p156, %p157
      %p159 = scmp.ne.s32.totalorder %s147, %s148
      %p160 = scmp.eq.s32.totalorder %s23, 1
      %p161 = por %p159, %p160
      %p163 = scmp.ne.s32.totalorder %s148, %s162
      %p164 = scmp.eq.s32.totalorder %s23, 0
      %p165 = por %p163, %p164
      %s167 = sadd.s32 %s166, 1
      %p170 = scmp.eq.s32.totalorder %s17, 1
      %p171 = scmp.ne.s32.totalorder %s166, %s168
      %p172 = scmp.eq.s32.totalorder %s17, 0
      %p173 = por %p171, %p172
      %p174 = scmp.ne.s32.totalorder %s166, %s168
      %p175 = scmp.eq.s32.totalorder %s22, 1
      %p176 = por %p174, %p175
      %p177 = scmp.ne.s32.totalorder %s168, %s169
      %p178 = scmp.eq.s32.totalorder %s22, 0
      %p179 = por %p177, %p178
      %p180 = scmp.ne.s32.totalorder %s168, %s169
      %p181 = scmp.eq.s32.totalorder %s23, 1
      %p182 = por %p180, %p181
      %p184 = scmp.ne.s32.totalorder %s169, %s183
      %p185 = scmp.eq.s32.totalorder %s23, 0
      %p186 = por %p184, %p185
      %s188 = sadd.s32 %s187, 1
      %p191 = scmp.eq.s32.totalorder %s17, 1
      %p192 = scmp.ne.s32.totalorder %s187, %s189
      %p193 = scmp.eq.s32.totalorder %s17, 0
      %p194 = por %p192, %p193
      %p195 = scmp.ne.s32.totalorder %s187, %s189
      %p196 = scmp.eq.s32.totalorder %s22, 1
      %p197 = por %p195, %p196
      %p198 = scmp.ne.s32.totalorder %s189, %s190
      %p199 = scmp.eq.s32.totalorder %s22, 0
      %p200 = por %p198, %p199
      %p201 = scmp.ne.s32.totalorder %s189, %s190
      %p202 = scmp.eq.s32.totalorder %s23, 1
      %p203 = por %p201, %p202
      %p205 = scmp.ne.s32.totalorder %s190, %s204
      %p206 = scmp.eq.s32.totalorder %s23, 0
      %p207 = por %p205, %p206
      %s209 = sadd.s32 %s208, 1
      %p212 = scmp.eq.s32.totalorder %s17, 1
      %p213 = scmp.ne.s32.totalorder %s208, %s210
      %p214 = scmp.eq.s32.totalorder %s17, 0
      %p215 = por %p213, %p214
      %p216 = scmp.ne.s32.totalorder %s208, %s210
      %p217 = scmp.eq.s32.totalorder %s22, 1
      %p218 = por %p216, %p217
      %p219 = scmp.ne.s32.totalorder %s210, %s211
      %p220 = scmp.eq.s32.totalorder %s22, 0
      %p221 = por %p219, %p220
      %p222 = scmp.ne.s32.totalorder %s210, %s211
      %p223 = scmp.eq.s32.totalorder %s23, 1
      %p224 = por %p222, %p223
      %p226 = scmp.ne.s32.totalorder %s211, %s225
      %p227 = scmp.eq.s32.totalorder %s23, 0
      %p228 = por %p226, %p227
      %p229 = scmp.le.s32.totalorder 1, %s17
      %p230 = scmp.lt.s32.totalorder %s17, 3
      %p231 = pnand %p229, %p230
      %p232 = pneg %p231
      // Predicated region
      $region9: #{diffusion_forward.1} parent=5 // pred_check
        _
      $region10: #{diffusion_forward.1} parent=5 // pred_check_branch
        %234 = sbr.rel (%p231) target = $region12
      $region11: #{diffusion_forward.1} parent=5 // pred_region
        %s235 = ssub.s32 %s17, 1
        // Predicated region
        $region13: #{diffusion_forward.1} parent=11 // pred_check
          %p236 = pneg %p38
        $region14: #{diffusion_forward.1} parent=11 // pred_check_branch
          %238 = sbr.rel (%p236) target = $region16
        $region15: #{diffusion_forward.1} parent=11 // pred_region
          %s240 = ssub.s32 16, 16
          %241 = vsyncadd [#allocation7], %s240
          %s243 = sshll.u32 %s0, 4
          %s244 = int_to_ptr.vmem [resolvable:$true] %s243
          %246 = dma.vmem_to_smem %s244, 16, [#allocation5], [#allocation7]
        $region16: #{diffusion_forward.1} parent=11 // pred_fallthru
          _
        // Predicated region
        $region17: #{diffusion_forward.1} parent=11 // pred_check
          %p247 = pneg %p59
        $region18: #{diffusion_forward.1} parent=11 // pred_check_branch
          %249 = sbr.rel (%p247) target = $region20
        $region19: #{diffusion_forward.1} parent=11 // pred_region
          %s251 = ssub.s32 16, 16
          %252 = vsyncadd [#allocation9], %s251
          %s254 = sshll.u32 %s1, 4
          %s255 = int_to_ptr.vmem [resolvable:$true] %s254
          %257 = dma.vmem_to_smem %s255, 16, [#allocation8], [#allocation9]
        $region20: #{diffusion_forward.1} parent=11 // pred_fallthru
          _
        // Predicated region
        $region21: #{diffusion_forward.1} parent=11 // pred_check
          %p258 = pneg %p158
        $region22: #{diffusion_forward.1} parent=11 // pred_check_branch
          %260 = sbr.rel (%p258) target = $region24
        $region23: #{diffusion_forward.1} parent=11 // pred_region
          _
        $region24: #{diffusion_forward.1} parent=11 // pred_fallthru
          _
        // Predicated region
        $region25: #{diffusion_forward.1} parent=11 // pred_check
          %p261 = pneg %p179
        $region26: #{diffusion_forward.1} parent=11 // pred_check_branch
          %263 = sbr.rel (%p261) target = $region28
        $region27: #{diffusion_forward.1} parent=11 // pred_region
          _
        $region28: #{diffusion_forward.1} parent=11 // pred_fallthru
          _
        // Predicated region
        $region29: #{diffusion_forward.1} parent=11 // pred_check
          %p264 = pneg %p200
        $region30: #{diffusion_forward.1} parent=11 // pred_check_branch
          %266 = sbr.rel (%p264) target = $region32
        $region31: #{diffusion_forward.1} parent=11 // pred_region
          _
        $region32: #{diffusion_forward.1} parent=11 // pred_fallthru
          _
      $region12: #{diffusion_forward.1} parent=5 // pred_fallthru
        _
      %p267 = scmp.lt.s32.totalorder %s17, 2
      // Predicated region
      $region33: #{diffusion_forward.1} parent=5 // pred_check
        %p268 = pneg %p267
      $region34: #{diffusion_forward.1} parent=5 // pred_check_branch
        %270 = sbr.rel (%p268) target = $region36
      $region35: #{diffusion_forward.1} parent=5 // pred_region
        // Predicated region
        $region37: #{diffusion_forward.1} parent=35 // pred_check
          %p271 = pneg %p79
        $region38: #{diffusion_forward.1} parent=35 // pred_check_branch
          %273 = sbr.rel (%p271) target = $region40
        $region39: #{diffusion_forward.1} parent=35 // pred_region
          %p274 = scmp.lt.s32.totalorder %s17, 1
          %s275 = scalar_select %p274, %s17, 1
          %s276 = smul.addr %s275, 2
          %s277 = smul.addr %s276, 4
          %s278 = scalar_lea.vmem %s2, %s277
        $region40: #{diffusion_forward.1} parent=35 // pred_fallthru
          _
        // Predicated region
        $region41: #{diffusion_forward.1} parent=35 // pred_check
          %p279 = pneg %p105
        $region42: #{diffusion_forward.1} parent=35 // pred_check_branch
          %281 = sbr.rel (%p279) target = $region44
        $region43: #{diffusion_forward.1} parent=35 // pred_region
          %p282 = scmp.lt.s32.totalorder %s17, 1
          %s283 = scalar_select %p282, %s17, 1
          %s284 = smul.addr %s283, 2
          %s285 = smul.addr %s284, 4
          %s286 = scalar_lea.vmem %s3, %s285
        $region44: #{diffusion_forward.1} parent=35 // pred_fallthru
          _
        // Predicated region
        $region45: #{diffusion_forward.1} parent=35 // pred_check
          %p287 = pneg %p131
        $region46: #{diffusion_forward.1} parent=35 // pred_check_branch
          %289 = sbr.rel (%p287) target = $region48
        $region47: #{diffusion_forward.1} parent=35 // pred_region
          %p290 = scmp.lt.s32.totalorder %s17, 1
          %s291 = scalar_select %p290, %s17, 1
          %s292 = smul.addr %s291, 4
          %s293 = smul.addr %s292, 8
          %s294 = scalar_lea.vmem %s4, %s293
        $region48: #{diffusion_forward.1} parent=35 // pred_fallthru
          _
      $region36: #{diffusion_forward.1} parent=5 // pred_fallthru
        _
      %p295 = scmp.le.s32.totalorder 1, %s17
      %p296 = scmp.lt.s32.totalorder %s17, 3
      %p297 = pnand %p295, %p296
      %p298 = pneg %p297
      // Predicated region
      $region49: #{diffusion_forward.1} parent=5 // pred_check
        _
      $region50: #{diffusion_forward.1} parent=5 // pred_check_branch
        %300 = sbr.rel (%p297) target = $region52
      $region51: #{diffusion_forward.1} parent=5 // pred_region
        %s301 = ssub.s32 %s17, 1
        // Predicated region
        $region53: #{diffusion_forward.1} parent=51 // pred_check
          %p302 = pneg %p38
        $region54: #{diffusion_forward.1} parent=51 // pred_check_branch
          %304 = sbr.rel (%p302) target = $region56
        $region55: #{diffusion_forward.1} parent=51 // pred_region
          %305 = dma.done [#allocation7], 16
        $region56: #{diffusion_forward.1} parent=51 // pred_fallthru
          _
        // Predicated region
        $region57: #{diffusion_forward.1} parent=51 // pred_check
          %p306 = pneg %p59
        $region58: #{diffusion_forward.1} parent=51 // pred_check_branch
          %308 = sbr.rel (%p306) target = $region60
        $region59: #{diffusion_forward.1} parent=51 // pred_region
          %309 = dma.done [#allocation9], 16
        $region60: #{diffusion_forward.1} parent=51 // pred_fallthru
          _
        %310 = sfence
        %p311 = pneg %p38
        %p312 = pneg %p35
        %p313 = pneg %p59
        %p314 = pneg %p56
        %p315 = scmp.lt.s32.totalorder %s22, 1
        %s316 = scalar_select %p315, %s22, 1
        %s317 = smul.addr %s316, 2
        %s318 = smul.addr %s317, 4
        %s319 = scalar_lea.vmem %s2, %s318
        %p320 = pneg %p85
        %p321 = pneg %p82
        %p322 = scmp.lt.s32.totalorder %s22, 1
        %s323 = scalar_select %p322, %s22, 1
        %s324 = smul.addr %s323, 2
        %s325 = smul.addr %s324, 4
        %s326 = scalar_lea.vmem %s3, %s325
        %p327 = pneg %p111
        %p328 = pneg %p108
        %p329 = scmp.lt.s32.totalorder %s22, 1
        %s330 = scalar_select %p329, %s22, 1
        %s331 = smul.addr %s330, 4
        %s332 = smul.addr %s331, 8
        %s333 = scalar_lea.vmem %s4, %s332
        %p334 = pneg %p137
        %p335 = pneg %p134
        %p336 = pneg %p158
        %p337 = pneg %p155
        %p338 = pneg %p179
        %p339 = pneg %p176
        %p340 = pneg %p200
        %p341 = pneg %p197
        %p342 = pneg %p221
        %p343 = pneg %p218
        %p344 = scmp.lt.s32.totalorder %s22, 1
        %s345 = scalar_select %p344, %s22, 1
        %s346 = smul.addr %s345, 2
        %s347 = smul.addr %s346, 4
        %s348 = scalar_lea.vmem %s2, %s347
        %p349 = scmp.lt.s32.totalorder %s22, 1
        %s350 = scalar_select %p349, %s22, 1
        %s351 = smul.addr %s350, 2
        %s352 = smul.addr %s351, 4
        %s353 = scalar_lea.vmem %s3, %s352
        %p354 = scmp.lt.s32.totalorder %s22, 1
        %s355 = scalar_select %p354, %s22, 1
        %s356 = smul.addr %s355, 4
        %s357 = smul.addr %s356, 8
        %s358 = scalar_lea.vmem %s4, %s357
        %p360 = scmp.eq.s32.totalorder %s22, 0
        // Predicated region
        $region61: #{diffusion_forward.1} parent=51 // pred_check
          %p361 = pneg %p360
        $region62: #{diffusion_forward.1} parent=51 // pred_check_branch
          %363 = sbr.rel (%p361) target = $region64
        $region63: #{diffusion_forward.1} parent=51 // pred_region
          %s364 = scalar_lea.smem [#allocation10], 0
          %365 = sst [smem:[%s364]] 0.0
        $region64: #{diffusion_forward.1} parent=51 // pred_fallthru
          _
        %366 = vst [vmem:[#allocation2] sm:$0xff] 0.0
        %367 = vst [vmem:[#allocation2 + $0x8] sm:$0xff] 0.0
        %368 = vst [vmem:[#allocation2 + $0x10] sm:$0xff] 0.0
        %369 = vst [vmem:[#allocation3] sm:$0xff] 0.0
        %370 = vst [vmem:[#allocation3 + $0x8] sm:$0xff] 0.0
        %371 = vst [vmem:[#allocation3 + $0x10] sm:$0xff] 0.0
        %372 = vst [vmem:[#allocation4] sm:$0xff] 0
        %373 = vst [vmem:[#allocation4 + $0x8] sm:$0xff] 0
        %374 = vst [vmem:[#allocation4 + $0x10] sm:$0xff] 0
        %375 = vst [vmem:[#allocation4 + $0x18] sm:$0xff] 0
        %376 = vst [vmem:[#allocation4 + $0x20] sm:$0xff] 0
        %377 = vst [vmem:[#allocation4 + $0x28] sm:$0xff] 0
        %378 = vst [vmem:[#allocation4 + $0x30] sm:$0xff] 0
        %379 = vst [vmem:[#allocation4 + $0x38] sm:$0xff] 0
        %380 = vst [vmem:[#allocation4 + $0x40] sm:$0xff] 0
        %381 = vst [vmem:[#allocation4 + $0x48] sm:$0xff] 0
        %382 = vst [vmem:[#allocation4 + $0x50] sm:$0xff] 0
        %383 = vst [vmem:[#allocation4 + $0x58] sm:$0xff] 0
        %s384 = sld [smem:[#allocation5 + %s22]]
        %s385 = sld [smem:[#allocation8 + %s22]]
        %v386 = vld [vmem:[%s348] sm:$0xff]
        %v387 = vld [vmem:[%s353] sm:$0xff]
        %v388 = vstv %s384
        %v389 = vmul.f32 %v388, %v386
        %v390 = vstv %s385
        %v391 = vmul.f32 %v390, %v387
        %v392 = vadd.f32 %v389, %v391
        %394 = vrot.lane.b32.xlu0 %v392, 66
        %v395 = vpop.permute.xlu0 %394
        %vm397 = vcmask 667152
        %398 = vst.msk [vmem:[#allocation2] sm:$0xf] %vm397, %v395
        %400 = vrot.lane.b32.xlu0 %v387, 66
        %v401 = vpop.permute.xlu0 %400
        %403 = vst.msk [vmem:[#allocation3] sm:$0xf] %vm397, %v401
        %404 = vrot.lane.b32.xlu0 %v392, 82
        %v405 = vpop.permute.xlu0 %404
        %vm407 = vcmask 929552
        %408 = vst.msk [vmem:[#allocation2] sm:$0xf] %vm407, %v405
        %409 = vrot.lane.b32.xlu0 %v387, 82
        %v410 = vpop.permute.xlu0 %409
        %412 = vst.msk [vmem:[#allocation3] sm:$0xf] %vm407, %v410
        %413 = vrot.lane.b32.xlu0 %v392, 98
        %v414 = vpop.permute.xlu0 %413
        %vm416 = vcmask 142352
        %417 = vst.msk [vmem:[#allocation2 + $0x4] sm:$0xf] %vm416, %v414
        %418 = vrot.lane.b32.xlu0 %v387, 98
        %v419 = vpop.permute.xlu0 %418
        %421 = vst.msk [vmem:[#allocation3 + $0x4] sm:$0xf] %vm416, %v419
        %422 = vrot.lane.b32.xlu0 %v392, 114
        %v423 = vpop.permute.xlu0 %422
        %vm425 = vcmask 404752
        %426 = vst.msk [vmem:[#allocation2 + $0x4] sm:$0xf] %vm425, %v423
        %427 = vrot.lane.b32.xlu0 %v387, 114
        %v428 = vpop.permute.xlu0 %427
        %430 = vst.msk [vmem:[#allocation3 + $0x4] sm:$0xf] %vm425, %v428
        %431 = vrot.lane.b32.xlu0 %v392, 2
        %v432 = vpop.permute.xlu0 %431
        %434 = vst.msk [vmem:[#allocation2 + $0x4] sm:$0xf] %vm397, %v432
        %435 = vrot.lane.b32.xlu0 %v387, 2
        %v436 = vpop.permute.xlu0 %435
        %438 = vst.msk [vmem:[#allocation3 + $0x4] sm:$0xf] %vm397, %v436
        %439 = vrot.lane.b32.xlu0 %v392, 18
        %v440 = vpop.permute.xlu0 %439
        %442 = vst.msk [vmem:[#allocation2 + $0x4] sm:$0xf] %vm407, %v440
        %443 = vrot.lane.b32.xlu0 %v387, 18
        %v444 = vpop.permute.xlu0 %443
        %446 = vst.msk [vmem:[#allocation3 + $0x4] sm:$0xf] %vm407, %v444
        %447 = vrot.lane.b32.xlu0 %v392, 34
        %v448 = vpop.permute.xlu0 %447
        %450 = vst.msk [vmem:[#allocation2 + $0x8] sm:$0xf] %vm416, %v448
        %451 = vrot.lane.b32.xlu0 %v387, 34
        %v452 = vpop.permute.xlu0 %451
        %454 = vst.msk [vmem:[#allocation3 + $0x8] sm:$0xf] %vm416, %v452
        %455 = vrot.lane.b32.xlu0 %v392, 50
        %v456 = vpop.permute.xlu0 %455
        %458 = vst.msk [vmem:[#allocation2 + $0x8] sm:$0xf] %vm425, %v456
        %459 = vrot.lane.b32.xlu0 %v387, 50
        %v460 = vpop.permute.xlu0 %459
        %462 = vst.msk [vmem:[#allocation3 + $0x8] sm:$0xf] %vm425, %v460
        %v463 = vrot.slane %v395, 4
        %vm464 = vcmask 539648
        %v465 = vsel %vm464, %v395, %v463
        %467 = vst.msk [vmem:[#allocation2 + $0x8] sm:$0xf] %vm397, %v465
        %v468 = vrot.slane %v401, 4
        %v469 = vsel %vm464, %v401, %v468
        %471 = vst.msk [vmem:[#allocation3 + $0x8] sm:$0xf] %vm397, %v469
        %v472 = vrot.slane %v405, 4
        %vm473 = vcmask 670720
        %v474 = vsel %vm473, %v405, %v472
        %476 = vst.msk [vmem:[#allocation2 + $0x8] sm:$0xf] %vm407, %v474
        %v477 = vrot.slane %v410, 4
        %v478 = vsel %vm473, %v410, %v477
        %480 = vst.msk [vmem:[#allocation3 + $0x8] sm:$0xf] %vm407, %v478
        %v481 = vrot.slane %v414, 4
        %483 = vst.msk [vmem:[#allocation2 + $0xc] sm:$0xf] %vm416, %v481
        %v484 = vrot.slane %v419, 4
        %486 = vst.msk [vmem:[#allocation3 + $0xc] sm:$0xf] %vm416, %v484
        %v487 = vrot.slane %v423, 4
        %489 = vst.msk [vmem:[#allocation2 + $0xc] sm:$0xf] %vm425, %v487
        %v490 = vrot.slane %v428, 4
        %492 = vst.msk [vmem:[#allocation3 + $0xc] sm:$0xf] %vm425, %v490
        %v493 = vrot.slane %v432, 4
        %vm494 = vcmask 15360
        %v495 = vsel %vm494, %v432, %v493
        %497 = vst.msk [vmem:[#allocation2 + $0xc] sm:$0xf] %vm397, %v495
        %v498 = vrot.slane %v436, 4
        %v499 = vsel %vm494, %v436, %v498
        %501 = vst.msk [vmem:[#allocation3 + $0xc] sm:$0xf] %vm397, %v499
        %v502 = vrot.slane %v440, 4
        %vm503 = vcmask 146432
        %v504 = vsel %vm503, %v440, %v502
        %506 = vst.msk [vmem:[#allocation2 + $0xc] sm:$0xf] %vm407, %v504
        %v507 = vrot.slane %v444, 4
        %v508 = vsel %vm503, %v444, %v507
        %510 = vst.msk [vmem:[#allocation3 + $0xc] sm:$0xf] %vm407, %v508
        %v511 = vrot.slane %v448, 4
        %513 = vst.msk [vmem:[#allocation2 + $0x10] sm:$0xf] %vm416, %v511
        %v514 = vrot.slane %v452, 4
        %516 = vst.msk [vmem:[#allocation3 + $0x10] sm:$0xf] %vm416, %v514
        %v517 = vrot.slane %v456, 4
        %519 = vst.msk [vmem:[#allocation2 + $0x10] sm:$0xf] %vm425, %v517
        %v520 = vrot.slane %v460, 4
        %522 = vst.msk [vmem:[#allocation3 + $0x10] sm:$0xf] %vm425, %v520
        %v523 = vlaneseq
        %v524 = vand.u32 %v523, 127
        %v525 = vadd.s32 %v524, 128
        %v526 = vadd.s32 %v524, 256
        %v527 = vadd.s32 %v524, 384
        %v528 = vadd.s32 %v524, 512
        %v529 = vshra.s32 %v524, 5
        %v530 = vshra.s32 %v525, 5
        %v531 = vshra.s32 %v526, 5
        %v532 = vshra.s32 %v527, 5
        %v533 = vshra.s32 %v528, 5
        %v534 = vand.u32 %v524, 31
        %v535 = vand.u32 %v525, 31
        %v536 = vand.u32 %v526, 31
        %v537 = vand.u32 %v527, 31
        %v538 = vand.u32 %v528, 31
        %vm539 = vcmp.ge.s32.totalorder %v529, 1
        %vm540 = vcmp.ge.s32.totalorder %v530, 1
        %vm541 = vcmp.ge.s32.totalorder %v531, 1
        %vm542 = vcmp.ge.s32.totalorder %v532, 1
        %vm543 = vcmp.ge.s32.totalorder %v533, 1
        %vm544 = vcmp.le.s32.totalorder %v529, 16
        %vm545 = vcmp.le.s32.totalorder %v530, 16
        %vm546 = vcmp.le.s32.totalorder %v531, 16
        %vm547 = vcmp.le.s32.totalorder %v532, 16
        %vm548 = vcmp.le.s32.totalorder %v533, 16
        %vm549 = vmand %vm539, %vm544
        %vm550 = vmand %vm540, %vm545
        %vm551 = vmand %vm541, %vm546
        %vm552 = vmand %vm542, %vm547
        %vm553 = vmand %vm543, %vm548
        %vm554 = vcmp.ge.s32.totalorder %v534, 1
        %vm555 = vcmp.ge.s32.totalorder %v535, 1
        %vm556 = vcmp.ge.s32.totalorder %v536, 1
        %vm557 = vcmp.ge.s32.totalorder %v537, 1
        %vm558 = vcmp.ge.s32.totalorder %v538, 1
        %vm559 = vmand %vm549, %vm554
        %vm560 = vmand %vm550, %vm555
        %vm561 = vmand %vm551, %vm556
        %vm562 = vmand %vm552, %vm557
        %vm563 = vmand %vm553, %vm558
        %vm564 = vcmp.le.s32.totalorder %v534, 16
        %vm565 = vcmp.le.s32.totalorder %v535, 16
        %vm566 = vcmp.le.s32.totalorder %v536, 16
        %vm567 = vcmp.le.s32.totalorder %v537, 16
        %vm568 = vcmp.le.s32.totalorder %v538, 16
        %vm569 = vmand %vm559, %vm564
        %vm570 = vmand %vm560, %vm565
        %vm571 = vmand %vm561, %vm566
        %vm572 = vmand %vm562, %vm567
        %vm573 = vmand %vm563, %vm568
        %v574 = vsel %vm569, 1, 0
        %v575 = vsel %vm570, 1, 0
        %v576 = vsel %vm571, 1, 0
        %v577 = vsel %vm572, 1, 0
        %v578 = vsel %vm573, 1, 0
        %v579 = vcvt.s32.f32 %v574
        %v580 = vcvt.s32.f32 %v575
        %v581 = vcvt.s32.f32 %v576
        %v582 = vcvt.s32.f32 %v577
        %v583 = vcvt.s32.f32 %v578
        %vm584 = vcmp.lt.s32.totalorder %v529, 16
        %vm585 = vcmp.lt.s32.totalorder %v530, 16
        %vm586 = vcmp.lt.s32.totalorder %v531, 16
        %vm587 = vcmp.lt.s32.totalorder %v532, 16
        %vm588 = vcmp.lt.s32.totalorder %v533, 16
        %vm589 = vcmp.lt.s32.totalorder %v534, 16
        %vm590 = vcmp.lt.s32.totalorder %v535, 16
        %vm591 = vcmp.lt.s32.totalorder %v536, 16
        %vm592 = vcmp.lt.s32.totalorder %v537, 16
        %vm593 = vcmp.lt.s32.totalorder %v538, 16
        %vm594 = vmand %vm584, %vm589
        %vm595 = vmand %vm585, %vm590
        %vm596 = vmand %vm586, %vm591
        %vm597 = vmand %vm587, %vm592
        %vm598 = vmand %vm588, %vm593
        %v599 = vsel %vm594, 1, 0
        %v600 = vsel %vm595, 1, 0
        %v601 = vsel %vm596, 1, 0
        %v602 = vsel %vm597, 1, 0
        %v603 = vsel %vm598, 1, 0
        %v604 = vcvt.s32.f32 %v599
        %v605 = vcvt.s32.f32 %v600
        %v606 = vcvt.s32.f32 %v601
        %v607 = vcvt.s32.f32 %v602
        %v608 = vcvt.s32.f32 %v603
        %v609 = vld [vmem:[#allocation2] sm:$0xff]
        %v610 = vld [vmem:[#allocation2 + $0x8] sm:$0xff]
        %v611 = vld [vmem:[#allocation2 + $0x10] sm:$0xf]
        %v612 = vld [vmem:[#allocation2] sm:$0xff]
        %v613 = vld [vmem:[#allocation2 + $0x8] sm:$0xff]
        %v614 = vld [vmem:[#allocation2 + $0x10] sm:$0xff]
        %v617 = vcombine.high %v609, %v609
        %v618 = vcombine.high %v610, %v610
        %v624 = vcombine.low %v612, %v612
        %v625 = vcombine.low %v613, %v613
        %v626 = vcombine.low %v614, %v614
        %627 = vrot.lane.b32.xlu0 %v624, 127
        %v628 = vpop.permute.xlu0 %627
        %629 = vrot.lane.b32.xlu0 %v612, 127
        %v630 = vpop.permute.xlu0 %629
        %631 = vrot.lane.b32.xlu0 %v625, 127
        %v632 = vpop.permute.xlu0 %631
        %633 = vrot.lane.b32.xlu0 %v613, 127
        %v634 = vpop.permute.xlu0 %633
        %635 = vrot.lane.b32.xlu0 %v626, 127
        %v636 = vpop.permute.xlu0 %635
        %637 = vrot.lane.b32.xlu0 %v614, 127
        %v638 = vpop.permute.xlu0 %637
        %vm639 = vcmask 1039360
        %v640 = vsel %vm639, %v628, %v630
        %v641 = vsel %vm639, %v630, %v632
        %v642 = vsel %vm639, %v632, %v634
        %v643 = vsel %vm639, %v634, %v636
        %v644 = vsel %vm639, %v636, %v638
        %v650 = vcombine.high %v612, %v612
        %v651 = vcombine.high %v613, %v613
        %v652 = vcombine.high %v614, %v614
        %653 = vrot.lane.b32.xlu0 %v612, 126
        %v654 = vpop.permute.xlu0 %653
        %655 = vrot.lane.b32.xlu0 %v650, 126
        %v656 = vpop.permute.xlu0 %655
        %657 = vrot.lane.b32.xlu0 %v613, 126
        %v658 = vpop.permute.xlu0 %657
        %659 = vrot.lane.b32.xlu0 %v651, 126
        %v660 = vpop.permute.xlu0 %659
        %661 = vrot.lane.b32.xlu0 %v614, 126
        %v662 = vpop.permute.xlu0 %661
        %663 = vrot.lane.b32.xlu0 %v652, 126
        %v664 = vpop.permute.xlu0 %663
        %vm665 = vcmask 1031168
        %v666 = vsel %vm665, %v654, %v656
        %v667 = vsel %vm665, %v656, %v658
        %v668 = vsel %vm665, %v658, %v660
        %v669 = vsel %vm665, %v660, %v662
        %v670 = vsel %vm665, %v662, %v664
        %676 = vrot.lane.b32.xlu0 %v624, 96
        %v677 = vpop.permute.xlu0 %676
        %678 = vrot.lane.b32.xlu0 %v612, 96
        %v679 = vpop.permute.xlu0 %678
        %680 = vrot.lane.b32.xlu0 %v625, 96
        %v681 = vpop.permute.xlu0 %680
        %682 = vrot.lane.b32.xlu0 %v613, 96
        %v683 = vpop.permute.xlu0 %682
        %684 = vrot.lane.b32.xlu0 %v626, 96
        %v685 = vpop.permute.xlu0 %684
        %686 = vrot.lane.b32.xlu0 %v614, 96
        %v687 = vpop.permute.xlu0 %686
        %vm688 = vcmask 785408
        %v689 = vsel %vm688, %v677, %v679
        %v690 = vsel %vm688, %v679, %v681
        %v691 = vsel %vm688, %v681, %v683
        %v692 = vsel %vm688, %v683, %v685
        %v693 = vsel %vm688, %v685, %v687
        %699 = vrot.lane.b32.xlu0 %v612, 95
        %v700 = vpop.permute.xlu0 %699
        %701 = vrot.lane.b32.xlu0 %v650, 95
        %v702 = vpop.permute.xlu0 %701
        %703 = vrot.lane.b32.xlu0 %v613, 95
        %v704 = vpop.permute.xlu0 %703
        %705 = vrot.lane.b32.xlu0 %v651, 95
        %v706 = vpop.permute.xlu0 %705
        %707 = vrot.lane.b32.xlu0 %v614, 95
        %v708 = vpop.permute.xlu0 %707
        %709 = vrot.lane.b32.xlu0 %v652, 95
        %v710 = vpop.permute.xlu0 %709
        %vm711 = vcmask 777216
        %v712 = vsel %vm711, %v700, %v702
        %v713 = vsel %vm711, %v702, %v704
        %v714 = vsel %vm711, %v704, %v706
        %v715 = vsel %vm711, %v706, %v708
        %v716 = vsel %vm711, %v708, %v710
        %722 = vrot.lane.b32.xlu0 %v624, 94
        %v723 = vpop.permute.xlu0 %722
        %724 = vrot.lane.b32.xlu0 %v612, 94
        %v725 = vpop.permute.xlu0 %724
        %726 = vrot.lane.b32.xlu0 %v625, 94
        %v727 = vpop.permute.xlu0 %726
        %728 = vrot.lane.b32.xlu0 %v613, 94
        %v729 = vpop.permute.xlu0 %728
        %730 = vrot.lane.b32.xlu0 %v626, 94
        %v731 = vpop.permute.xlu0 %730
        %732 = vrot.lane.b32.xlu0 %v614, 94
        %v733 = vpop.permute.xlu0 %732
        %vm734 = vcmask 769024
        %v735 = vsel %vm734, %v723, %v725
        %v736 = vsel %vm734, %v725, %v727
        %v737 = vsel %vm734, %v727, %v729
        %v738 = vsel %vm734, %v729, %v731
        %v739 = vsel %vm734, %v731, %v733
        %745 = vrot.lane.b32.xlu0 %v612, 64
        %v746 = vpop.permute.xlu0 %745
        %747 = vrot.lane.b32.xlu0 %v650, 64
        %v748 = vpop.permute.xlu0 %747
        %749 = vrot.lane.b32.xlu0 %v613, 64
        %v750 = vpop.permute.xlu0 %749
        %751 = vrot.lane.b32.xlu0 %v651, 64
        %v752 = vpop.permute.xlu0 %751
        %753 = vrot.lane.b32.xlu0 %v614, 64
        %v754 = vpop.permute.xlu0 %753
        %755 = vrot.lane.b32.xlu0 %v652, 64
        %v756 = vpop.permute.xlu0 %755
        %vm757 = vcmask 523264
        %v758 = vsel %vm757, %v746, %v748
        %v759 = vsel %vm757, %v748, %v750
        %v760 = vsel %vm757, %v750, %v752
        %v761 = vsel %vm757, %v752, %v754
        %v762 = vsel %vm757, %v754, %v756
        %768 = vrot.lane.b32.xlu0 %v624, 63
        %v769 = vpop.permute.xlu0 %768
        %770 = vrot.lane.b32.xlu0 %v612, 63
        %v771 = vpop.permute.xlu0 %770
        %772 = vrot.lane.b32.xlu0 %v625, 63
        %v773 = vpop.permute.xlu0 %772
        %774 = vrot.lane.b32.xlu0 %v613, 63
        %v775 = vpop.permute.xlu0 %774
        %776 = vrot.lane.b32.xlu0 %v626, 63
        %v777 = vpop.permute.xlu0 %776
        %778 = vrot.lane.b32.xlu0 %v614, 63
        %v779 = vpop.permute.xlu0 %778
        %vm780 = vcmask 515072
        %v781 = vsel %vm780, %v769, %v771
        %v782 = vsel %vm780, %v771, %v773
        %v783 = vsel %vm780, %v773, %v775
        %v784 = vsel %vm780, %v775, %v777
        %v785 = vsel %vm780, %v777, %v779
        %791 = vrot.lane.b32.xlu0 %v612, 62
        %v792 = vpop.permute.xlu0 %791
        %793 = vrot.lane.b32.xlu0 %v650, 62
        %v794 = vpop.permute.xlu0 %793
        %795 = vrot.lane.b32.xlu0 %v613, 62
        %v796 = vpop.permute.xlu0 %795
        %797 = vrot.lane.b32.xlu0 %v651, 62
        %v798 = vpop.permute.xlu0 %797
        %799 = vrot.lane.b32.xlu0 %v614, 62
        %v800 = vpop.permute.xlu0 %799
        %801 = vrot.lane.b32.xlu0 %v652, 62
        %v802 = vpop.permute.xlu0 %801
        %vm803 = vcmask 506880
        %v804 = vsel %vm803, %v792, %v794
        %v805 = vsel %vm803, %v794, %v796
        %v806 = vsel %vm803, %v796, %v798
        %v807 = vsel %vm803, %v798, %v800
        %v808 = vsel %vm803, %v800, %v802
        %vm814 = vcmask 1043456
        %v815 = vsel %vm814, %v609, %v640
        %v816 = vsel %vm814, %v617, %v641
        %v817 = vsel %vm814, %v610, %v642
        %v818 = vsel %vm814, %v618, %v643
        %v819 = vsel %vm814, %v611, %v644
        %v820 = vsel %vm814, %v666, %v689
        %v821 = vsel %vm814, %v667, %v690
        %v822 = vsel %vm814, %v668, %v691
        %v823 = vsel %vm814, %v669, %v692
        %v824 = vsel %vm814, %v670, %v693
        %v825 = vsel %vm814, %v712, %v735
        %v826 = vsel %vm814, %v713, %v736
        %v827 = vsel %vm814, %v714, %v737
        %v828 = vsel %vm814, %v715, %v738
        %v829 = vsel %vm814, %v716, %v739
        %v830 = vsel %vm814, %v758, %v781
        %v831 = vsel %vm814, %v759, %v782
        %v832 = vsel %vm814, %v760, %v783
        %v833 = vsel %vm814, %v761, %v784
        %v834 = vsel %vm814, %v762, %v785
        %v835 = vpack.c.bf16 %v820, %v815
        %v836 = vpack.c.bf16 %v821, %v816
        %v837 = vpack.c.bf16 %v822, %v817
        %v838 = vpack.c.bf16 %v823, %v818
        %v839 = vpack.c.bf16 %v824, %v819
        %v840 = vpack.c.bf16 %v830, %v825
        %v841 = vpack.c.bf16 %v831, %v826
        %v842 = vpack.c.bf16 %v832, %v827
        %v843 = vpack.c.bf16 %v833, %v828
        %v844 = vpack.c.bf16 %v834, %v829
        %v845 = vpack.c.bf16 %v804, %v804
        %v846 = vpack.c.bf16 %v805, %v805
        %v847 = vpack.c.bf16 %v806, %v806
        %v848 = vpack.c.bf16 %v807, %v807
        %v849 = vpack.c.bf16 %v808, %v808
        %v850 = vld [vmem:[%s5] sm:$0xf]
        %v851 = vld [vmem:[%s5 + $0x4] sm:$0xf]
        %v852 = vld [vmem:[%s5 + $0x8] sm:$0xf]
        %v853 = vld [vmem:[%s5 + $0xc] sm:$0xf]
        %v854 = vld [vmem:[%s358] sm:$0xff]
        %v855 = vld [vmem:[%s358 + $0x8] sm:$0xff]
        %v856 = vld [vmem:[%s358 + $0x10] sm:$0xff]
        %v857 = vld [vmem:[%s358 + $0x18] sm:$0xff]
        %859 = vset.pattern.permute.xlu0 0
        %860 = vperm.xlu0 %859, %v854
        %v861 = vpop.permute.xlu0 %860
        %864 = vset.pattern.permute.xlu0 0
        %865 = vperm.xlu0 %864, %v855
        %v866 = vpop.permute.xlu0 %865
        %869 = vset.pattern.permute.xlu0 0
        %870 = vperm.xlu0 %869, %v856
        %v871 = vpop.permute.xlu0 %870
        %874 = vset.pattern.permute.xlu0 0
        %875 = vperm.xlu0 %874, %v857
        %v876 = vpop.permute.xlu0 %875
        %v882 = vunpack.c.l.b16 %v850
        %v883 = vunpack.c.l.b16 %v851
        %v884 = vunpack.c.l.b16 %v852
        %v885 = vunpack.c.l.b16 %v853
        %v886 = vpack.c.b16 %v883, %v882
        %v887 = vpack.c.b16 %v885, %v884
        %vm888 = vcmask 293888
        %v890 = vsel %vm888, %v886, 0
        %v893 = vsel %vm888, %v887, 0
        %vm895 = vcmask 1041408
        %v897 = vsel %vm895, %v845, 0
        %v900 = vsel %vm895, %v846, 0
        %v903 = vsel %vm895, %v847, 0
        %v906 = vsel %vm895, %v848, 0
        %v909 = vsel %vm895, %v849, 0
        %911 = vmatprep.subr.bf16.mxu0 %v836
        %912 = vmatpush1.bf16.msra.mxu0 %v835
        %913 = vmatprep.subr.bf16.mxu0 %v841
        %914 = vmatpush1.bf16.msra.mxu0 %v840
        %915 = vmatprep.subr.bf16.mxu0 %v900
        %916 = vmatpush1.bf16.msra.mxu0 %v897
        %917 = vmatprep.subr.bf16.mxu0 0
        %918 = vmatpush1.bf16.msra.mxu0 0
        %919 = vmatprep.subr.bf16.mxu0 0
        %920 = vmatpush1.bf16.msra.mxu0 0
        %921 = vmatprep.subr.bf16.mxu0 0
        %922 = vmatpush1.bf16.msra.mxu0 0
        %923 = vmatprep.subr.bf16.mxu0 0
        %924 = vmatpush1.bf16.msra.mxu0 0
        %925 = vmatprep.subr.bf16.mxu0 0
        %926 = vmatpush1.bf16.msra.mxu0 0
        %927 = vmatprep.subr.bf16.mxu0 0
        %928 = vmatpush1.bf16.msra.mxu0 0
        %929 = vmatprep.subr.bf16.mxu0 0
        %930 = vmatpush1.bf16.msra.mxu0 0
        %931 = vmatprep.subr.bf16.mxu0 0
        %932 = vmatpush1.bf16.msra.mxu0 0
        %933 = vmatprep.subr.bf16.mxu0 0
        %934 = vmatpush1.bf16.msra.mxu0 0
        %935 = vmatprep.subr.bf16.mxu0 0
        %936 = vmatpush1.bf16.msra.mxu0 0
        %937 = vmatprep.subr.bf16.mxu0 0
        %938 = vmatpush1.bf16.msra.mxu0 0
        %939 = vmatprep.subr.bf16.mxu0 0
        %940 = vmatpush1.bf16.msra.mxu0 0
        %941 = vmatprep.subr.bf16.mxu0 0
        %942 = vmatpush1.bf16.msra.mxu0 0
        %943 = vmatprep.mubr.bf16.mxu0 0
        %944 = vmatmul.mubr.bf16.gmra.mrb[0].mxu0 %v890
        %v945 = vpop.f32.mrb[0].mxu0
        %v946 = vadd.f32 %v861, %v945
        %v947 = vpop.f32.mrb[0].mxu0
        %v948 = vadd.f32 %v861, %v947
        %v949 = vpop.f32.mrb[0].mxu0
        %v950 = vadd.f32 %v866, %v949
        %v951 = vpop.f32.mrb[0].mxu0
        %v952 = vadd.f32 %v866, %v951
        %953 = vmatprep.mubr.bf16.mxu0 0
        %954 = vmatmul.mubr.bf16.gmra.mrb[0].mxu0 %v893
        %v955 = vpop.f32.mrb[0].mxu0
        %v956 = vadd.f32 %v871, %v955
        %v957 = vpop.f32.mrb[0].mxu0
        %v958 = vadd.f32 %v871, %v957
        %v959 = vpop.f32.mrb[0].mxu0
        %v960 = vadd.f32 %v876, %v959
        %v961 = vpop.f32.mrb[0].mxu0
        %v962 = vadd.f32 %v876, %v961
        %963 = vdwg.mxu0
        %964 = vmatprep.subr.bf16.mxu0 %v838
        %965 = vmatpush1.bf16.msra.mxu0 %v837
        %966 = vmatprep.subr.bf16.mxu0 %v843
        %967 = vmatpush1.bf16.msra.mxu0 %v842
        %968 = vmatprep.subr.bf16.mxu0 %v906
        %969 = vmatpush1.bf16.msra.mxu0 %v903
        %970 = vmatprep.subr.bf16.mxu0 0
        %971 = vmatpush1.bf16.msra.mxu0 0
        %972 = vmatprep.subr.bf16.mxu0 0
        %973 = vmatpush1.bf16.msra.mxu0 0
        %974 = vmatprep.subr.bf16.mxu0 0
        %975 = vmatpush1.bf16.msra.mxu0 0
        %976 = vmatprep.subr.bf16.mxu0 0
        %977 = vmatpush1.bf16.msra.mxu0 0
        %978 = vmatprep.subr.bf16.mxu0 0
        %979 = vmatpush1.bf16.msra.mxu0 0
        %980 = vmatprep.subr.bf16.mxu0 0
        %981 = vmatpush1.bf16.msra.mxu0 0
        %982 = vmatprep.subr.bf16.mxu0 0
        %983 = vmatpush1.bf16.msra.mxu0 0
        %984 = vmatprep.subr.bf16.mxu0 0
        %985 = vmatpush1.bf16.msra.mxu0 0
        %986 = vmatprep.subr.bf16.mxu0 0
        %987 = vmatpush1.bf16.msra.mxu0 0
        %988 = vmatprep.subr.bf16.mxu0 0
        %989 = vmatpush1.bf16.msra.mxu0 0
        %990 = vmatprep.subr.bf16.mxu0 0
        %991 = vmatpush1.bf16.msra.mxu0 0
        %992 = vmatprep.subr.bf16.mxu0 0
        %993 = vmatpush1.bf16.msra.mxu0 0
        %994 = vmatprep.subr.bf16.mxu0 0
        %995 = vmatpush1.bf16.msra.mxu0 0
        %996 = vmatprep.mubr.bf16.mxu0 0
        %997 = vmatmul.mubr.bf16.gmra.mrb[0].mxu0 %v890
        %v998 = vpop.f32.mrb[0].mxu0
        %v999 = vadd.f32 %v861, %v998
        %v1000 = vpop.f32.mrb[0].mxu0
        %v1001 = vadd.f32 %v861, %v1000
        %v1002 = vpop.f32.mrb[0].mxu0
        %v1003 = vadd.f32 %v866, %v1002
        %v1004 = vpop.f32.mrb[0].mxu0
        %v1005 = vadd.f32 %v866, %v1004
        %1006 = vmatprep.mubr.bf16.mxu0 0
        %1007 = vmatmul.mubr.bf16.gmra.mrb[0].mxu0 %v893
        %v1008 = vpop.f32.mrb[0].mxu0
        %v1009 = vadd.f32 %v871, %v1008
        %v1010 = vpop.f32.mrb[0].mxu0
        %v1011 = vadd.f32 %v871, %v1010
        %v1012 = vpop.f32.mrb[0].mxu0
        %v1013 = vadd.f32 %v876, %v1012
        %v1014 = vpop.f32.mrb[0].mxu0
        %v1015 = vadd.f32 %v876, %v1014
        %1016 = vdwg.mxu0
        %1017 = vmatprep.subr.bf16.mxu0 0
        %1018 = vmatpush1.bf16.msra.mxu0 %v839
        %1019 = vmatprep.subr.bf16.mxu0 0
        %1020 = vmatpush1.bf16.msra.mxu0 %v844
        %1021 = vmatprep.subr.bf16.mxu0 0
        %1022 = vmatpush1.bf16.msra.mxu0 %v909
        %1023 = vmatprep.subr.bf16.mxu0 0
        %1024 = vmatpush1.bf16.msra.mxu0 0
        %1025 = vmatprep.subr.bf16.mxu0 0
        %1026 = vmatpush1.bf16.msra.mxu0 0
        %1027 = vmatprep.subr.bf16.mxu0 0
        %1028 = vmatpush1.bf16.msra.mxu0 0
        %1029 = vmatprep.subr.bf16.mxu0 0
        %1030 = vmatpush1.bf16.msra.mxu0 0
        %1031 = vmatprep.subr.bf16.mxu0 0
        %1032 = vmatpush1.bf16.msra.mxu0 0
        %1033 = vmatprep.subr.bf16.mxu0 0
        %1034 = vmatpush1.bf16.msra.mxu0 0
        %1035 = vmatprep.subr.bf16.mxu0 0
        %1036 = vmatpush1.bf16.msra.mxu0 0
        %1037 = vmatprep.subr.bf16.mxu0 0
        %1038 = vmatpush1.bf16.msra.mxu0 0
        %1039 = vmatprep.subr.bf16.mxu0 0
        %1040 = vmatpush1.bf16.msra.mxu0 0
        %1041 = vmatprep.subr.bf16.mxu0 0
        %1042 = vmatpush1.bf16.msra.mxu0 0
        %1043 = vmatprep.subr.bf16.mxu0 0
        %1044 = vmatpush1.bf16.msra.mxu0 0
        %1045 = vmatprep.subr.bf16.mxu0 0
        %1046 = vmatpush1.bf16.msra.mxu0 0
        %1047 = vmatprep.subr.bf16.mxu0 0
        %1048 = vmatpush1.bf16.msra.mxu0 0
        %1049 = vmatprep.mubr.bf16.mxu0 0
        %1050 = vmatmul.mubr.bf16.gmra.mrb[0].mxu0 %v890
        %v1051 = vpop.f32.mrb[0].mxu0
        %v1052 = vadd.f32 %v861, %v1051
        %v1053 = vpop.f32.mrb[0].mxu0
        %v1054 = vpop.f32.mrb[0].mxu0
        %v1055 = vadd.f32 %v866, %v1054
        %v1056 = vpop.f32.mrb[0].mxu0
        %1057 = vmatprep.mubr.bf16.mxu0 0
        %1058 = vmatmul.mubr.bf16.gmra.mrb[0].mxu0 %v893
        %v1059 = vpop.f32.mrb[0].mxu0
        %v1060 = vadd.f32 %v871, %v1059
        %v1061 = vpop.f32.mrb[0].mxu0
        %v1062 = vpop.f32.mrb[0].mxu0
        %v1063 = vadd.f32 %v876, %v1062
        %v1064 = vpop.f32.mrb[0].mxu0
        %1065 = vdwg.mxu0
        %v1066 = vxor.u32 %v946, 2147483648
        %v1067 = vxor.u32 %v948, 2147483648
        %v1068 = vxor.u32 %v999, 2147483648
        %v1069 = vxor.u32 %v1001, 2147483648
        %v1070 = vxor.u32 %v1052, 2147483648
        %v1071 = vxor.u32 %v950, 2147483648
        %v1072 = vxor.u32 %v952, 2147483648
        %v1073 = vxor.u32 %v1003, 2147483648
        %v1074 = vxor.u32 %v1005, 2147483648
        %v1075 = vxor.u32 %v1055, 2147483648
        %v1076 = vxor.u32 %v956, 2147483648
        %v1077 = vxor.u32 %v958, 2147483648
        %v1078 = vxor.u32 %v1009, 2147483648
        %v1079 = vxor.u32 %v1011, 2147483648
        %v1080 = vxor.u32 %v1060, 2147483648
        %v1081 = vxor.u32 %v960, 2147483648
        %v1082 = vxor.u32 %v962, 2147483648
        %v1083 = vxor.u32 %v1013, 2147483648
        %v1084 = vxor.u32 %v1015, 2147483648
        %v1085 = vxor.u32 %v1063, 2147483648
        %v1086 = vmul.f32 %v1066, 1.442695
        %v1087 = vpow.pop %v1086
        %v1088 = vmul.f32 %v1067, 1.442695
        %v1089 = vpow.pop %v1088
        %v1090 = vmul.f32 %v1068, 1.442695
        %v1091 = vpow.pop %v1090
        %v1092 = vmul.f32 %v1069, 1.442695
        %v1093 = vpow.pop %v1092
        %v1094 = vmul.f32 %v1070, 1.442695
        %v1095 = vpow.pop %v1094
        %v1096 = vmul.f32 %v1071, 1.442695
        %v1097 = vpow.pop %v1096
        %v1098 = vmul.f32 %v1072, 1.442695
        %v1099 = vpow.pop %v1098
        %v1100 = vmul.f32 %v1073, 1.442695
        %v1101 = vpow.pop %v1100
        %v1102 = vmul.f32 %v1074, 1.442695
        %v1103 = vpow.pop %v1102
        %v1104 = vmul.f32 %v1075, 1.442695
        %v1105 = vpow.pop %v1104
        %v1106 = vmul.f32 %v1076, 1.442695
        %v1107 = vpow.pop %v1106
        %v1108 = vmul.f32 %v1077, 1.442695
        %v1109 = vpow.pop %v1108
        %v1110 = vmul.f32 %v1078, 1.442695
        %v1111 = vpow.pop %v1110
        %v1112 = vmul.f32 %v1079, 1.442695
        %v1113 = vpow.pop %v1112
        %v1114 = vmul.f32 %v1080, 1.442695
        %v1115 = vpow.pop %v1114
        %v1116 = vmul.f32 %v1081, 1.442695
        %v1117 = vpow.pop %v1116
        %v1118 = vmul.f32 %v1082, 1.442695
        %v1119 = vpow.pop %v1118
        %v1120 = vmul.f32 %v1083, 1.442695
        %v1121 = vpow.pop %v1120
        %v1122 = vmul.f32 %v1084, 1.442695
        %v1123 = vpow.pop %v1122
        %v1124 = vmul.f32 %v1085, 1.442695
        %v1125 = vpow.pop %v1124
        %v1126 = vadd.f32 %v1087, 1.0
        %v1127 = vadd.f32 %v1089, 1.0
        %v1128 = vadd.f32 %v1091, 1.0
        %v1129 = vadd.f32 %v1093, 1.0
        %v1130 = vadd.f32 %v1095, 1.0
        %v1131 = vadd.f32 %v1097, 1.0
        %v1132 = vadd.f32 %v1099, 1.0
        %v1133 = vadd.f32 %v1101, 1.0
        %v1134 = vadd.f32 %v1103, 1.0
        %v1135 = vadd.f32 %v1105, 1.0
        %v1136 = vadd.f32 %v1107, 1.0
        %v1137 = vadd.f32 %v1109, 1.0
        %v1138 = vadd.f32 %v1111, 1.0
        %v1139 = vadd.f32 %v1113, 1.0
        %v1140 = vadd.f32 %v1115, 1.0
        %v1141 = vadd.f32 %v1117, 1.0
        %v1142 = vadd.f32 %v1119, 1.0
        %v1143 = vadd.f32 %v1121, 1.0
        %v1144 = vadd.f32 %v1123, 1.0
        %v1145 = vadd.f32 %v1125, 1.0
        %v1146 = vrcp.pop %v1126
        %v1147 = vmul.f32 1.0, %v1146
        %v1148 = vrcp.pop %v1127
        %v1149 = vmul.f32 1.0, %v1148
        %v1150 = vrcp.pop %v1128
        %v1151 = vmul.f32 1.0, %v1150
        %v1152 = vrcp.pop %v1129
        %v1153 = vmul.f32 1.0, %v1152
        %v1154 = vrcp.pop %v1130
        %v1155 = vmul.f32 1.0, %v1154
        %v1156 = vrcp.pop %v1131
        %v1157 = vmul.f32 1.0, %v1156
        %v1158 = vrcp.pop %v1132
        %v1159 = vmul.f32 1.0, %v1158
        %v1160 = vrcp.pop %v1133
        %v1161 = vmul.f32 1.0, %v1160
        %v1162 = vrcp.pop %v1134
        %v1163 = vmul.f32 1.0, %v1162
        %v1164 = vrcp.pop %v1135
        %v1165 = vmul.f32 1.0, %v1164
        %v1166 = vrcp.pop %v1136
        %v1167 = vmul.f32 1.0, %v1166
        %v1168 = vrcp.pop %v1137
        %v1169 = vmul.f32 1.0, %v1168
        %v1170 = vrcp.pop %v1138
        %v1171 = vmul.f32 1.0, %v1170
        %v1172 = vrcp.pop %v1139
        %v1173 = vmul.f32 1.0, %v1172
        %v1174 = vrcp.pop %v1140
        %v1175 = vmul.f32 1.0, %v1174
        %v1176 = vrcp.pop %v1141
        %v1177 = vmul.f32 1.0, %v1176
        %v1178 = vrcp.pop %v1142
        %v1179 = vmul.f32 1.0, %v1178
        %v1180 = vrcp.pop %v1143
        %v1181 = vmul.f32 1.0, %v1180
        %v1182 = vrcp.pop %v1144
        %v1183 = vmul.f32 1.0, %v1182
        %v1184 = vrcp.pop %v1145
        %v1185 = vmul.f32 1.0, %v1184
        %v1186 = vmul.f32 %v946, %v1147
        %v1187 = vmul.f32 %v948, %v1149
        %v1188 = vmul.f32 %v999, %v1151
        %v1189 = vmul.f32 %v1001, %v1153
        %v1190 = vmul.f32 %v1052, %v1155
        %v1191 = vmul.f32 %v950, %v1157
        %v1192 = vmul.f32 %v952, %v1159
        %v1193 = vmul.f32 %v1003, %v1161
        %v1194 = vmul.f32 %v1005, %v1163
        %v1195 = vmul.f32 %v1055, %v1165
        %v1196 = vmul.f32 %v956, %v1167
        %v1197 = vmul.f32 %v958, %v1169
        %v1198 = vmul.f32 %v1009, %v1171
        %v1199 = vmul.f32 %v1011, %v1173
        %v1200 = vmul.f32 %v1060, %v1175
        %v1201 = vmul.f32 %v960, %v1177
        %v1202 = vmul.f32 %v962, %v1179
        %v1203 = vmul.f32 %v1013, %v1181
        %v1204 = vmul.f32 %v1015, %v1183
        %v1205 = vmul.f32 %v1063, %v1185
        %v1206 = vmul.f32 %v1186, %v579
        %v1207 = vmul.f32 %v1187, %v580
        %v1208 = vmul.f32 %v1188, %v581
        %v1209 = vmul.f32 %v1189, %v582
        %v1210 = vmul.f32 %v1190, %v583
        %v1211 = vmul.f32 %v1191, %v579
        %v1212 = vmul.f32 %v1192, %v580
        %v1213 = vmul.f32 %v1193, %v581
        %v1214 = vmul.f32 %v1194, %v582
        %v1215 = vmul.f32 %v1195, %v583
        %v1216 = vmul.f32 %v1196, %v579
        %v1217 = vmul.f32 %v1197, %v580
        %v1218 = vmul.f32 %v1198, %v581
        %v1219 = vmul.f32 %v1199, %v582
        %v1220 = vmul.f32 %v1200, %v583
        %v1221 = vmul.f32 %v1201, %v579
        %v1222 = vmul.f32 %v1202, %v580
        %v1223 = vmul.f32 %v1203, %v581
        %v1224 = vmul.f32 %v1204, %v582
        %v1225 = vmul.f32 %v1205, %v583
        %v1226 = vpack.c.bf16 %v1211, %v1206
        %v1227 = vpack.c.bf16 %v1212, %v1207
        %v1228 = vpack.c.bf16 %v1213, %v1208
        %v1229 = vpack.c.bf16 %v1214, %v1209
        %v1230 = vpack.c.bf16 %v1215, %v1210
        %v1231 = vpack.c.bf16 %v1221, %v1216
        %v1232 = vpack.c.bf16 %v1222, %v1217
        %v1233 = vpack.c.bf16 %v1223, %v1218
        %v1234 = vpack.c.bf16 %v1224, %v1219
        %v1235 = vpack.c.bf16 %v1225, %v1220
        %1236 = vst [vmem:[#allocation4] sm:$0xff] %v1226
        %1237 = vst [vmem:[#allocation4 + $0x8] sm:$0xff] %v1227
        %1238 = vst [vmem:[#allocation4 + $0x10] sm:$0xff] %v1228
        %1239 = vst [vmem:[#allocation4 + $0x18] sm:$0xff] %v1229
        %1240 = vst [vmem:[#allocation4 + $0x20] sm:$0xff] %v1230
        %1241 = vst [vmem:[#allocation4 + $0x30] sm:$0xff] %v1231
        %1242 = vst [vmem:[#allocation4 + $0x38] sm:$0xff] %v1232
        %1243 = vst [vmem:[#allocation4 + $0x40] sm:$0xff] %v1233
        %1244 = vst [vmem:[#allocation4 + $0x48] sm:$0xff] %v1234
        %1245 = vst [vmem:[#allocation4 + $0x50] sm:$0xff] %v1235
        %v1246 = vld [vmem:[#allocation4] sm:$0xff]
        %v1247 = vld [vmem:[#allocation4 + $0x8] sm:$0xff]
        %v1248 = vld [vmem:[#allocation4 + $0x10] sm:$0xff]
        %v1249 = vld [vmem:[#allocation4 + $0x18] sm:$0xff]
        %v1250 = vld [vmem:[#allocation4 + $0x20] sm:$0xff]
        %v1251 = vld [vmem:[#allocation4 + $0x30] sm:$0xff]
        %v1252 = vld [vmem:[#allocation4 + $0x38] sm:$0xff]
        %v1253 = vld [vmem:[#allocation4 + $0x40] sm:$0xff]
        %v1254 = vld [vmem:[#allocation4 + $0x48] sm:$0xff]
        %v1255 = vld [vmem:[#allocation4 + $0x50] sm:$0xff]
        %v1256 = vld [vmem:[#allocation4] sm:$0xff]
        %v1257 = vld [vmem:[#allocation4 + $0x8] sm:$0xff]
        %v1258 = vld [vmem:[#allocation4 + $0x10] sm:$0xff]
        %v1259 = vld [vmem:[#allocation4 + $0x18] sm:$0xff]
        %v1260 = vld [vmem:[#allocation4 + $0x20] sm:$0xff]
        %v1261 = vld [vmem:[#allocation4 + $0x28] sm:$0xff]
        %v1262 = vld [vmem:[#allocation4 + $0x30] sm:$0xff]
        %v1263 = vld [vmem:[#allocation4 + $0x38] sm:$0xff]
        %v1264 = vld [vmem:[#allocation4 + $0x40] sm:$0xff]
        %v1265 = vld [vmem:[#allocation4 + $0x48] sm:$0xff]
        %v1266 = vld [vmem:[#allocation4 + $0x50] sm:$0xff]
        %v1267 = vld [vmem:[#allocation4 + $0x58] sm:$0xff]
        %1280 = vrot.lane.b32.xlu0 %v1256, 127
        %v1281 = vpop.permute.xlu0 %1280
        %1282 = vrot.lane.b32.xlu0 %v1257, 127
        %v1283 = vpop.permute.xlu0 %1282
        %1284 = vrot.lane.b32.xlu0 %v1258, 127
        %v1285 = vpop.permute.xlu0 %1284
        %1286 = vrot.lane.b32.xlu0 %v1259, 127
        %v1287 = vpop.permute.xlu0 %1286
        %1288 = vrot.lane.b32.xlu0 %v1260, 127
        %v1289 = vpop.permute.xlu0 %1288
        %1290 = vrot.lane.b32.xlu0 %v1261, 127
        %v1291 = vpop.permute.xlu0 %1290
        %1292 = vrot.lane.b32.xlu0 %v1262, 127
        %v1293 = vpop.permute.xlu0 %1292
        %1294 = vrot.lane.b32.xlu0 %v1263, 127
        %v1295 = vpop.permute.xlu0 %1294
        %1296 = vrot.lane.b32.xlu0 %v1264, 127
        %v1297 = vpop.permute.xlu0 %1296
        %1298 = vrot.lane.b32.xlu0 %v1265, 127
        %v1299 = vpop.permute.xlu0 %1298
        %1300 = vrot.lane.b32.xlu0 %v1266, 127
        %v1301 = vpop.permute.xlu0 %1300
        %1302 = vrot.lane.b32.xlu0 %v1267, 127
        %v1303 = vpop.permute.xlu0 %1302
        %vm1304 = vcmask 1039360
        %v1305 = vsel %vm1304, %v1281, %v1283
        %v1306 = vsel %vm1304, %v1283, %v1285
        %v1307 = vsel %vm1304, %v1285, %v1287
        %v1308 = vsel %vm1304, %v1287, %v1289
        %v1309 = vsel %vm1304, %v1289, %v1291
        %v1310 = vsel %vm1304, %v1293, %v1295
        %v1311 = vsel %vm1304, %v1295, %v1297
        %v1312 = vsel %vm1304, %v1297, %v1299
        %v1313 = vsel %vm1304, %v1299, %v1301
        %v1314 = vsel %vm1304, %v1301, %v1303
        %1325 = vrot.lane.b32.xlu0 %v1256, 126
        %v1326 = vpop.permute.xlu0 %1325
        %1327 = vrot.lane.b32.xlu0 %v1257, 126
        %v1328 = vpop.permute.xlu0 %1327
        %1329 = vrot.lane.b32.xlu0 %v1258, 126
        %v1330 = vpop.permute.xlu0 %1329
        %1331 = vrot.lane.b32.xlu0 %v1259, 126
        %v1332 = vpop.permute.xlu0 %1331
        %1333 = vrot.lane.b32.xlu0 %v1260, 126
        %v1334 = vpop.permute.xlu0 %1333
        %1335 = vrot.lane.b32.xlu0 %v1261, 126
        %v1336 = vpop.permute.xlu0 %1335
        %1337 = vrot.lane.b32.xlu0 %v1262, 126
        %v1338 = vpop.permute.xlu0 %1337
        %1339 = vrot.lane.b32.xlu0 %v1263, 126
        %v1340 = vpop.permute.xlu0 %1339
        %1341 = vrot.lane.b32.xlu0 %v1264, 126
        %v1342 = vpop.permute.xlu0 %1341
        %1343 = vrot.lane.b32.xlu0 %v1265, 126
        %v1344 = vpop.permute.xlu0 %1343
        %1345 = vrot.lane.b32.xlu0 %v1266, 126
        %v1346 = vpop.permute.xlu0 %1345
        %1347 = vrot.lane.b32.xlu0 %v1267, 126
        %v1348 = vpop.permute.xlu0 %1347
        %vm1349 = vcmask 1031168
        %v1350 = vsel %vm1349, %v1326, %v1328
        %v1351 = vsel %vm1349, %v1328, %v1330
        %v1352 = vsel %vm1349, %v1330, %v1332
        %v1353 = vsel %vm1349, %v1332, %v1334
        %v1354 = vsel %vm1349, %v1334, %v1336
        %v1355 = vsel %vm1349, %v1338, %v1340
        %v1356 = vsel %vm1349, %v1340, %v1342
        %v1357 = vsel %vm1349, %v1342, %v1344
        %v1358 = vsel %vm1349, %v1344, %v1346
        %v1359 = vsel %vm1349, %v1346, %v1348
        %1370 = vrot.lane.b32.xlu0 %v1256, 96
        %v1371 = vpop.permute.xlu0 %1370
        %1372 = vrot.lane.b32.xlu0 %v1257, 96
        %v1373 = vpop.permute.xlu0 %1372
        %1374 = vrot.lane.b32.xlu0 %v1258, 96
        %v1375 = vpop.permute.xlu0 %1374
        %1376 = vrot.lane.b32.xlu0 %v1259, 96
        %v1377 = vpop.permute.xlu0 %1376
        %1378 = vrot.lane.b32.xlu0 %v1260, 96
        %v1379 = vpop.permute.xlu0 %1378
        %1380 = vrot.lane.b32.xlu0 %v1261, 96
        %v1381 = vpop.permute.xlu0 %1380
        %1382 = vrot.lane.b32.xlu0 %v1262, 96
        %v1383 = vpop.permute.xlu0 %1382
        %1384 = vrot.lane.b32.xlu0 %v1263, 96
        %v1385 = vpop.permute.xlu0 %1384
        %1386 = vrot.lane.b32.xlu0 %v1264, 96
        %v1387 = vpop.permute.xlu0 %1386
        %1388 = vrot.lane.b32.xlu0 %v1265, 96
        %v1389 = vpop.permute.xlu0 %1388
        %1390 = vrot.lane.b32.xlu0 %v1266, 96
        %v1391 = vpop.permute.xlu0 %1390
        %1392 = vrot.lane.b32.xlu0 %v1267, 96
        %v1393 = vpop.permute.xlu0 %1392
        %vm1394 = vcmask 785408
        %v1395 = vsel %vm1394, %v1371, %v1373
        %v1396 = vsel %vm1394, %v1373, %v1375
        %v1397 = vsel %vm1394, %v1375, %v1377
        %v1398 = vsel %vm1394, %v1377, %v1379
        %v1399 = vsel %vm1394, %v1379, %v1381
        %v1400 = vsel %vm1394, %v1383, %v1385
        %v1401 = vsel %vm1394, %v1385, %v1387
        %v1402 = vsel %vm1394, %v1387, %v1389
        %v1403 = vsel %vm1394, %v1389, %v1391
        %v1404 = vsel %vm1394, %v1391, %v1393
        %1415 = vrot.lane.b32.xlu0 %v1256, 95
        %v1416 = vpop.permute.xlu0 %1415
        %1417 = vrot.lane.b32.xlu0 %v1257, 95
        %v1418 = vpop.permute.xlu0 %1417
        %1419 = vrot.lane.b32.xlu0 %v1258, 95
        %v1420 = vpop.permute.xlu0 %1419
        %1421 = vrot.lane.b32.xlu0 %v1259, 95
        %v1422 = vpop.permute.xlu0 %1421
        %1423 = vrot.lane.b32.xlu0 %v1260, 95
        %v1424 = vpop.permute.xlu0 %1423
        %1425 = vrot.lane.b32.xlu0 %v1261, 95
        %v1426 = vpop.permute.xlu0 %1425
        %1427 = vrot.lane.b32.xlu0 %v1262, 95
        %v1428 = vpop.permute.xlu0 %1427
        %1429 = vrot.lane.b32.xlu0 %v1263, 95
        %v1430 = vpop.permute.xlu0 %1429
        %1431 = vrot.lane.b32.xlu0 %v1264, 95
        %v1432 = vpop.permute.xlu0 %1431
        %1433 = vrot.lane.b32.xlu0 %v1265, 95
        %v1434 = vpop.permute.xlu0 %1433
        %1435 = vrot.lane.b32.xlu0 %v1266, 95
        %v1436 = vpop.permute.xlu0 %1435
        %1437 = vrot.lane.b32.xlu0 %v1267, 95
        %v1438 = vpop.permute.xlu0 %1437
        %vm1439 = vcmask 777216
        %v1440 = vsel %vm1439, %v1416, %v1418
        %v1441 = vsel %vm1439, %v1418, %v1420
        %v1442 = vsel %vm1439, %v1420, %v1422
        %v1443 = vsel %vm1439, %v1422, %v1424
        %v1444 = vsel %vm1439, %v1424, %v1426
        %v1445 = vsel %vm1439, %v1428, %v1430
        %v1446 = vsel %vm1439, %v1430, %v1432
        %v1447 = vsel %vm1439, %v1432, %v1434
        %v1448 = vsel %vm1439, %v1434, %v1436
        %v1449 = vsel %vm1439, %v1436, %v1438
        %1460 = vrot.lane.b32.xlu0 %v1256, 94
        %v1461 = vpop.permute.xlu0 %1460
        %1462 = vrot.lane.b32.xlu0 %v1257, 94
        %v1463 = vpop.permute.xlu0 %1462
        %1464 = vrot.lane.b32.xlu0 %v1258, 94
        %v1465 = vpop.permute.xlu0 %1464
        %1466 = vrot.lane.b32.xlu0 %v1259, 94
        %v1467 = vpop.permute.xlu0 %1466
        %1468 = vrot.lane.b32.xlu0 %v1260, 94
        %v1469 = vpop.permute.xlu0 %1468
        %1470 = vrot.lane.b32.xlu0 %v1261, 94
        %v1471 = vpop.permute.xlu0 %1470
        %1472 = vrot.lane.b32.xlu0 %v1262, 94
        %v1473 = vpop.permute.xlu0 %1472
        %1474 = vrot.lane.b32.xlu0 %v1263, 94
        %v1475 = vpop.permute.xlu0 %1474
        %1476 = vrot.lane.b32.xlu0 %v1264, 94
        %v1477 = vpop.permute.xlu0 %1476
        %1478 = vrot.lane.b32.xlu0 %v1265, 94
        %v1479 = vpop.permute.xlu0 %1478
        %1480 = vrot.lane.b32.xlu0 %v1266, 94
        %v1481 = vpop.permute.xlu0 %1480
        %1482 = vrot.lane.b32.xlu0 %v1267, 94
        %v1483 = vpop.permute.xlu0 %1482
        %vm1484 = vcmask 769024
        %v1485 = vsel %vm1484, %v1461, %v1463
        %v1486 = vsel %vm1484, %v1463, %v1465
        %v1487 = vsel %vm1484, %v1465, %v1467
        %v1488 = vsel %vm1484, %v1467, %v1469
        %v1489 = vsel %vm1484, %v1469, %v1471
        %v1490 = vsel %vm1484, %v1473, %v1475
        %v1491 = vsel %vm1484, %v1475, %v1477
        %v1492 = vsel %vm1484, %v1477, %v1479
        %v1493 = vsel %vm1484, %v1479, %v1481
        %v1494 = vsel %vm1484, %v1481, %v1483
        %1505 = vrot.lane.b32.xlu0 %v1256, 64
        %v1506 = vpop.permute.xlu0 %1505
        %1507 = vrot.lane.b32.xlu0 %v1257, 64
        %v1508 = vpop.permute.xlu0 %1507
        %1509 = vrot.lane.b32.xlu0 %v1258, 64
        %v1510 = vpop.permute.xlu0 %1509
        %1511 = vrot.lane.b32.xlu0 %v1259, 64
        %v1512 = vpop.permute.xlu0 %1511
        %1513 = vrot.lane.b32.xlu0 %v1260, 64
        %v1514 = vpop.permute.xlu0 %1513
        %1515 = vrot.lane.b32.xlu0 %v1261, 64
        %v1516 = vpop.permute.xlu0 %1515
        %1517 = vrot.lane.b32.xlu0 %v1262, 64
        %v1518 = vpop.permute.xlu0 %1517
        %1519 = vrot.lane.b32.xlu0 %v1263, 64
        %v1520 = vpop.permute.xlu0 %1519
        %1521 = vrot.lane.b32.xlu0 %v1264, 64
        %v1522 = vpop.permute.xlu0 %1521
        %1523 = vrot.lane.b32.xlu0 %v1265, 64
        %v1524 = vpop.permute.xlu0 %1523
        %1525 = vrot.lane.b32.xlu0 %v1266, 64
        %v1526 = vpop.permute.xlu0 %1525
        %1527 = vrot.lane.b32.xlu0 %v1267, 64
        %v1528 = vpop.permute.xlu0 %1527
        %vm1529 = vcmask 523264
        %v1530 = vsel %vm1529, %v1506, %v1508
        %v1531 = vsel %vm1529, %v1508, %v1510
        %v1532 = vsel %vm1529, %v1510, %v1512
        %v1533 = vsel %vm1529, %v1512, %v1514
        %v1534 = vsel %vm1529, %v1514, %v1516
        %v1535 = vsel %vm1529, %v1518, %v1520
        %v1536 = vsel %vm1529, %v1520, %v1522
        %v1537 = vsel %vm1529, %v1522, %v1524
        %v1538 = vsel %vm1529, %v1524, %v1526
        %v1539 = vsel %vm1529, %v1526, %v1528
        %1550 = vrot.lane.b32.xlu0 %v1256, 63
        %v1551 = vpop.permute.xlu0 %1550
        %1552 = vrot.lane.b32.xlu0 %v1257, 63
        %v1553 = vpop.permute.xlu0 %1552
        %1554 = vrot.lane.b32.xlu0 %v1258, 63
        %v1555 = vpop.permute.xlu0 %1554
        %1556 = vrot.lane.b32.xlu0 %v1259, 63
        %v1557 = vpop.permute.xlu0 %1556
        %1558 = vrot.lane.b32.xlu0 %v1260, 63
        %v1559 = vpop.permute.xlu0 %1558
        %1560 = vrot.lane.b32.xlu0 %v1261, 63
        %v1561 = vpop.permute.xlu0 %1560
        %1562 = vrot.lane.b32.xlu0 %v1262, 63
        %v1563 = vpop.permute.xlu0 %1562
        %1564 = vrot.lane.b32.xlu0 %v1263, 63
        %v1565 = vpop.permute.xlu0 %1564
        %1566 = vrot.lane.b32.xlu0 %v1264, 63
        %v1567 = vpop.permute.xlu0 %1566
        %1568 = vrot.lane.b32.xlu0 %v1265, 63
        %v1569 = vpop.permute.xlu0 %1568
        %1570 = vrot.lane.b32.xlu0 %v1266, 63
        %v1571 = vpop.permute.xlu0 %1570
        %1572 = vrot.lane.b32.xlu0 %v1267, 63
        %v1573 = vpop.permute.xlu0 %1572
        %vm1574 = vcmask 515072
        %v1575 = vsel %vm1574, %v1551, %v1553
        %v1576 = vsel %vm1574, %v1553, %v1555
        %v1577 = vsel %vm1574, %v1555, %v1557
        %v1578 = vsel %vm1574, %v1557, %v1559
        %v1579 = vsel %vm1574, %v1559, %v1561
        %v1580 = vsel %vm1574, %v1563, %v1565
        %v1581 = vsel %vm1574, %v1565, %v1567
        %v1582 = vsel %vm1574, %v1567, %v1569
        %v1583 = vsel %vm1574, %v1569, %v1571
        %v1584 = vsel %vm1574, %v1571, %v1573
        %1595 = vrot.lane.b32.xlu0 %v1256, 62
        %v1596 = vpop.permute.xlu0 %1595
        %1597 = vrot.lane.b32.xlu0 %v1257, 62
        %v1598 = vpop.permute.xlu0 %1597
        %1599 = vrot.lane.b32.xlu0 %v1258, 62
        %v1600 = vpop.permute.xlu0 %1599
        %1601 = vrot.lane.b32.xlu0 %v1259, 62
        %v1602 = vpop.permute.xlu0 %1601
        %1603 = vrot.lane.b32.xlu0 %v1260, 62
        %v1604 = vpop.permute.xlu0 %1603
        %1605 = vrot.lane.b32.xlu0 %v1261, 62
        %v1606 = vpop.permute.xlu0 %1605
        %1607 = vrot.lane.b32.xlu0 %v1262, 62
        %v1608 = vpop.permute.xlu0 %1607
        %1609 = vrot.lane.b32.xlu0 %v1263, 62
        %v1610 = vpop.permute.xlu0 %1609
        %1611 = vrot.lane.b32.xlu0 %v1264, 62
        %v1612 = vpop.permute.xlu0 %1611
        %1613 = vrot.lane.b32.xlu0 %v1265, 62
        %v1614 = vpop.permute.xlu0 %1613
        %1615 = vrot.lane.b32.xlu0 %v1266, 62
        %v1616 = vpop.permute.xlu0 %1615
        %1617 = vrot.lane.b32.xlu0 %v1267, 62
        %v1618 = vpop.permute.xlu0 %1617
        %vm1619 = vcmask 506880
        %v1620 = vsel %vm1619, %v1596, %v1598
        %v1621 = vsel %vm1619, %v1598, %v1600
        %v1622 = vsel %vm1619, %v1600, %v1602
        %v1623 = vsel %vm1619, %v1602, %v1604
        %v1624 = vsel %vm1619, %v1604, %v1606
        %v1625 = vsel %vm1619, %v1608, %v1610
        %v1626 = vsel %vm1619, %v1610, %v1612
        %v1627 = vsel %vm1619, %v1612, %v1614
        %v1628 = vsel %vm1619, %v1614, %v1616
        %v1629 = vsel %vm1619, %v1616, %v1618
        %v1640 = vld [vmem:[%s6] sm:$0x3f]
        %v1641 = vld [vmem:[%s7] sm:$0xf]
        %1643 = vset.pattern.permute.xlu0 0
        %1644 = vperm.xlu0 %1643, %v1641
        %v1645 = vpop.permute.xlu0 %1644
        %v1648 = vcombine.high %v1640, %v1640
        %v1650 = vunpack.c.l.s4 1983009808
        %v1651 = vunpack.c.0.s8 %v1650
        %v1652 = vlaneseq
        %v1653 = vshrl.u32 %v1652, 7
        %v1654 = vsub.s32 %v1651, %v1653
        %v1655 = vrot.slane %v1640, %v1654
        %v1657 = vunpack.c.l.s4 1983009808
        %v1658 = vunpack.c.0.s8 %v1657
        %v1659 = vlaneseq
        %v1660 = vshrl.u32 %v1659, 7
        %v1661 = vsub.s32 %v1658, %v1660
        %v1662 = vrot.slane %v1648, %v1661
        %v1663 = vcombine.high %v1655, %v1655
        %vm1666 = vcmask 261120
        %v1668 = vsel %vm1666, %v1662, 0
        %1670 = vmatprep.subr.bf16.mxu0 %v1247
        %1671 = vmatpush1.bf16.msra.mxu0 %v1246
        %1672 = vmatprep.subr.bf16.mxu0 %v1252
        %1673 = vmatpush1.bf16.msra.mxu0 %v1251
        %1674 = vmatprep.subr.bf16.mxu0 %v1306
        %1675 = vmatpush1.bf16.msra.mxu0 %v1305
        %1676 = vmatprep.subr.bf16.mxu0 %v1311
        %1677 = vmatpush1.bf16.msra.mxu0 %v1310
        %1678 = vmatprep.subr.bf16.mxu0 %v1351
        %1679 = vmatpush1.bf16.msra.mxu0 %v1350
        %1680 = vmatprep.subr.bf16.mxu0 %v1356
        %1681 = vmatpush1.bf16.msra.mxu0 %v1355
        %1682 = vmatprep.subr.bf16.mxu0 %v1396
        %1683 = vmatpush1.bf16.msra.mxu0 %v1395
        %1684 = vmatprep.subr.bf16.mxu0 %v1401
        %1685 = vmatpush1.bf16.msra.mxu0 %v1400
        %1686 = vmatprep.subr.bf16.mxu0 %v1441
        %1687 = vmatpush1.bf16.msra.mxu0 %v1440
        %1688 = vmatprep.subr.bf16.mxu0 %v1446
        %1689 = vmatpush1.bf16.msra.mxu0 %v1445
        %1690 = vmatprep.subr.bf16.mxu0 %v1486
        %1691 = vmatpush1.bf16.msra.mxu0 %v1485
        %1692 = vmatprep.subr.bf16.mxu0 %v1491
        %1693 = vmatpush1.bf16.msra.mxu0 %v1490
        %1694 = vmatprep.subr.bf16.mxu0 %v1531
        %1695 = vmatpush1.bf16.msra.mxu0 %v1530
        %1696 = vmatprep.subr.bf16.mxu0 %v1536
        %1697 = vmatpush1.bf16.msra.mxu0 %v1535
        %1698 = vmatprep.subr.bf16.mxu0 %v1576
        %1699 = vmatpush1.bf16.msra.mxu0 %v1575
        %1700 = vmatprep.subr.bf16.mxu0 %v1581
        %1701 = vmatpush1.bf16.msra.mxu0 %v1580
        %1702 = vmatprep.mubr.bf16.mxu0 %v1663
        %1703 = vmatmul.mubr.bf16.gmra.mrb[0].mxu0 %v1655
        %v1704 = vpop.f32.mrb[0].mxu0
        %v1705 = vadd.f32 %v1645, %v1704
        %v1706 = vpop.f32.mrb[0].mxu0
        %v1707 = vadd.f32 %v1645, %v1706
        %v1708 = vpop.f32.mrb[0].mxu0
        %v1709 = vpop.f32.mrb[0].mxu0
        %1710 = vdwg.mxu0
        %1711 = vmatprep.subr.bf16.mxu0 %v1621
        %1712 = vmatpush1.bf16.msra.mxu0 %v1620
        %1713 = vmatprep.subr.bf16.mxu0 %v1626
        %1714 = vmatpush1.bf16.msra.mxu0 %v1625
        %1715 = vmatprep.subr.bf16.mxu0 0
        %1716 = vmatpush1.bf16.msra.mxu0 0
        %1717 = vmatprep.subr.bf16.mxu0 0
        %1718 = vmatpush1.bf16.msra.mxu0 0
        %1719 = vmatprep.subr.bf16.mxu0 0
        %1720 = vmatpush1.bf16.msra.mxu0 0
        %1721 = vmatprep.subr.bf16.mxu0 0
        %1722 = vmatpush1.bf16.msra.mxu0 0
        %1723 = vmatprep.subr.bf16.mxu0 0
        %1724 = vmatpush1.bf16.msra.mxu0 0
        %1725 = vmatprep.subr.bf16.mxu0 0
        %1726 = vmatpush1.bf16.msra.mxu0 0
        %1727 = vmatprep.subr.bf16.mxu0 0
        %1728 = vmatpush1.bf16.msra.mxu0 0
        %1729 = vmatprep.subr.bf16.mxu0 0
        %1730 = vmatpush1.bf16.msra.mxu0 0
        %1731 = vmatprep.subr.bf16.mxu0 0
        %1732 = vmatpush1.bf16.msra.mxu0 0
        %1733 = vmatprep.subr.bf16.mxu0 0
        %1734 = vmatpush1.bf16.msra.mxu0 0
        %1735 = vmatprep.subr.bf16.mxu0 0
        %1736 = vmatpush1.bf16.msra.mxu0 0
        %1737 = vmatprep.subr.bf16.mxu0 0
        %1738 = vmatpush1.bf16.msra.mxu0 0
        %1739 = vmatprep.subr.bf16.mxu0 0
        %1740 = vmatpush1.bf16.msra.mxu0 0
        %1741 = vmatprep.subr.bf16.mxu0 0
        %1742 = vmatpush1.bf16.msra.mxu0 0
        %1743 = vmatprep.mubr.bf16.mxu0 0
        %1744 = vmatmul.mubr.bf16.gmra.mrb[0].mxu0 %v1668
        %v1745 = vpop.f32.mrb[0].mxu0
        %v1746 = vadd.f32 %v1705, %v1745
        %v1747 = vpop.f32.mrb[0].mxu0
        %v1748 = vadd.f32 %v1707, %v1747
        %v1749 = vpop.f32.mrb[0].mxu0
        %v1750 = vpop.f32.mrb[0].mxu0
        %1751 = vdwg.mxu0
        %1752 = vmatprep.subr.bf16.mxu0 %v1249
        %1753 = vmatpush1.bf16.msra.mxu0 %v1248
        %1754 = vmatprep.subr.bf16.mxu0 %v1254
        %1755 = vmatpush1.bf16.msra.mxu0 %v1253
        %1756 = vmatprep.subr.bf16.mxu0 %v1308
        %1757 = vmatpush1.bf16.msra.mxu0 %v1307
        %1758 = vmatprep.subr.bf16.mxu0 %v1313
        %1759 = vmatpush1.bf16.msra.mxu0 %v1312
        %1760 = vmatprep.subr.bf16.mxu0 %v1353
        %1761 = vmatpush1.bf16.msra.mxu0 %v1352
        %1762 = vmatprep.subr.bf16.mxu0 %v1358
        %1763 = vmatpush1.bf16.msra.mxu0 %v1357
        %1764 = vmatprep.subr.bf16.mxu0 %v1398
        %1765 = vmatpush1.bf16.msra.mxu0 %v1397
        %1766 = vmatprep.subr.bf16.mxu0 %v1403
        %1767 = vmatpush1.bf16.msra.mxu0 %v1402
        %1768 = vmatprep.subr.bf16.mxu0 %v1443
        %1769 = vmatpush1.bf16.msra.mxu0 %v1442
        %1770 = vmatprep.subr.bf16.mxu0 %v1448
        %1771 = vmatpush1.bf16.msra.mxu0 %v1447
        %1772 = vmatprep.subr.bf16.mxu0 %v1488
        %1773 = vmatpush1.bf16.msra.mxu0 %v1487
        %1774 = vmatprep.subr.bf16.mxu0 %v1493
        %1775 = vmatpush1.bf16.msra.mxu0 %v1492
        %1776 = vmatprep.subr.bf16.mxu0 %v1533
        %1777 = vmatpush1.bf16.msra.mxu0 %v1532
        %1778 = vmatprep.subr.bf16.mxu0 %v1538
        %1779 = vmatpush1.bf16.msra.mxu0 %v1537
        %1780 = vmatprep.subr.bf16.mxu0 %v1578
        %1781 = vmatpush1.bf16.msra.mxu0 %v1577
        %1782 = vmatprep.subr.bf16.mxu0 %v1583
        %1783 = vmatpush1.bf16.msra.mxu0 %v1582
        %1784 = vmatprep.mubr.bf16.mxu0 %v1663
        %1785 = vmatmul.mubr.bf16.gmra.mrb[0].mxu0 %v1655
        %v1786 = vpop.f32.mrb[0].mxu0
        %v1787 = vadd.f32 %v1645, %v1786
        %v1788 = vpop.f32.mrb[0].mxu0
        %v1789 = vadd.f32 %v1645, %v1788
        %v1790 = vpop.f32.mrb[0].mxu0
        %v1791 = vpop.f32.mrb[0].mxu0
        %1792 = vdwg.mxu0
        %1793 = vmatprep.subr.bf16.mxu0 %v1623
        %1794 = vmatpush1.bf16.msra.mxu0 %v1622
        %1795 = vmatprep.subr.bf16.mxu0 %v1628
        %1796 = vmatpush1.bf16.msra.mxu0 %v1627
        %1797 = vmatprep.subr.bf16.mxu0 0
        %1798 = vmatpush1.bf16.msra.mxu0 0
        %1799 = vmatprep.subr.bf16.mxu0 0
        %1800 = vmatpush1.bf16.msra.mxu0 0
        %1801 = vmatprep.subr.bf16.mxu0 0
        %1802 = vmatpush1.bf16.msra.mxu0 0
        %1803 = vmatprep.subr.bf16.mxu0 0
        %1804 = vmatpush1.bf16.msra.mxu0 0
        %1805 = vmatprep.subr.bf16.mxu0 0
        %1806 = vmatpush1.bf16.msra.mxu0 0
        %1807 = vmatprep.subr.bf16.mxu0 0
        %1808 = vmatpush1.bf16.msra.mxu0 0
        %1809 = vmatprep.subr.bf16.mxu0 0
        %1810 = vmatpush1.bf16.msra.mxu0 0
        %1811 = vmatprep.subr.bf16.mxu0 0
        %1812 = vmatpush1.bf16.msra.mxu0 0
        %1813 = vmatprep.subr.bf16.mxu0 0
        %1814 = vmatpush1.bf16.msra.mxu0 0
        %1815 = vmatprep.subr.bf16.mxu0 0
        %1816 = vmatpush1.bf16.msra.mxu0 0
        %1817 = vmatprep.subr.bf16.mxu0 0
        %1818 = vmatpush1.bf16.msra.mxu0 0
        %1819 = vmatprep.subr.bf16.mxu0 0
        %1820 = vmatpush1.bf16.msra.mxu0 0
        %1821 = vmatprep.subr.bf16.mxu0 0
        %1822 = vmatpush1.bf16.msra.mxu0 0
        %1823 = vmatprep.subr.bf16.mxu0 0
        %1824 = vmatpush1.bf16.msra.mxu0 0
        %1825 = vmatprep.mubr.bf16.mxu0 0
        %1826 = vmatmul.mubr.bf16.gmra.mrb[0].mxu0 %v1668
        %v1827 = vpop.f32.mrb[0].mxu0
        %v1828 = vadd.f32 %v1787, %v1827
        %v1829 = vpop.f32.mrb[0].mxu0
        %v1830 = vadd.f32 %v1789, %v1829
        %v1831 = vpop.f32.mrb[0].mxu0
        %v1832 = vpop.f32.mrb[0].mxu0
        %1833 = vdwg.mxu0
        %1834 = vmatprep.subr.bf16.mxu0 0
        %1835 = vmatpush1.bf16.msra.mxu0 %v1250
        %1836 = vmatprep.subr.bf16.mxu0 0
        %1837 = vmatpush1.bf16.msra.mxu0 %v1255
        %1838 = vmatprep.subr.bf16.mxu0 0
        %1839 = vmatpush1.bf16.msra.mxu0 %v1309
        %1840 = vmatprep.subr.bf16.mxu0 0
        %1841 = vmatpush1.bf16.msra.mxu0 %v1314
        %1842 = vmatprep.subr.bf16.mxu0 0
        %1843 = vmatpush1.bf16.msra.mxu0 %v1354
        %1844 = vmatprep.subr.bf16.mxu0 0
        %1845 = vmatpush1.bf16.msra.mxu0 %v1359
        %1846 = vmatprep.subr.bf16.mxu0 0
        %1847 = vmatpush1.bf16.msra.mxu0 %v1399
        %1848 = vmatprep.subr.bf16.mxu0 0
        %1849 = vmatpush1.bf16.msra.mxu0 %v1404
        %1850 = vmatprep.subr.bf16.mxu0 0
        %1851 = vmatpush1.bf16.msra.mxu0 %v1444
        %1852 = vmatprep.subr.bf16.mxu0 0
        %1853 = vmatpush1.bf16.msra.mxu0 %v1449
        %1854 = vmatprep.subr.bf16.mxu0 0
        %1855 = vmatpush1.bf16.msra.mxu0 %v1489
        %1856 = vmatprep.subr.bf16.mxu0 0
        %1857 = vmatpush1.bf16.msra.mxu0 %v1494
        %1858 = vmatprep.subr.bf16.mxu0 0
        %1859 = vmatpush1.bf16.msra.mxu0 %v1534
        %1860 = vmatprep.subr.bf16.mxu0 0
        %1861 = vmatpush1.bf16.msra.mxu0 %v1539
        %1862 = vmatprep.subr.bf16.mxu0 0
        %1863 = vmatpush1.bf16.msra.mxu0 %v1579
        %1864 = vmatprep.subr.bf16.mxu0 0
        %1865 = vmatpush1.bf16.msra.mxu0 %v1584
        %1866 = vmatprep.mubr.bf16.mxu0 %v1663
        %1867 = vmatmul.mubr.bf16.gmra.mrb[0].mxu0 %v1655
        %v1868 = vpop.f32.mrb[0].mxu0
        %v1869 = vadd.f32 %v1645, %v1868
        %v1870 = vpop.f32.mrb[0].mxu0
        %v1871 = vpop.f32.mrb[0].mxu0
        %v1872 = vpop.f32.mrb[0].mxu0
        %1873 = vdwg.mxu0
        %1874 = vmatprep.subr.bf16.mxu0 0
        %1875 = vmatpush1.bf16.msra.mxu0 %v1624
        %1876 = vmatprep.subr.bf16.mxu0 0
        %1877 = vmatpush1.bf16.msra.mxu0 %v1629
        %1878 = vmatprep.subr.bf16.mxu0 0
        %1879 = vmatpush1.bf16.msra.mxu0 0
        %1880 = vmatprep.subr.bf16.mxu0 0
        %1881 = vmatpush1.bf16.msra.mxu0 0
        %1882 = vmatprep.subr.bf16.mxu0 0
        %1883 = vmatpush1.bf16.msra.mxu0 0
        %1884 = vmatprep.subr.bf16.mxu0 0
        %1885 = vmatpush1.bf16.msra.mxu0 0
        %1886 = vmatprep.subr.bf16.mxu0 0
        %1887 = vmatpush1.bf16.msra.mxu0 0
        %1888 = vmatprep.subr.bf16.mxu0 0
        %1889 = vmatpush1.bf16.msra.mxu0 0
        %1890 = vmatprep.subr.bf16.mxu0 0
        %1891 = vmatpush1.bf16.msra.mxu0 0
        %1892 = vmatprep.subr.bf16.mxu0 0
        %1893 = vmatpush1.bf16.msra.mxu0 0
        %1894 = vmatprep.subr.bf16.mxu0 0
        %1895 = vmatpush1.bf16.msra.mxu0 0
        %1896 = vmatprep.subr.bf16.mxu0 0
        %1897 = vmatpush1.bf16.msra.mxu0 0
        %1898 = vmatprep.subr.bf16.mxu0 0
        %1899 = vmatpush1.bf16.msra.mxu0 0
        %1900 = vmatprep.subr.bf16.mxu0 0
        %1901 = vmatpush1.bf16.msra.mxu0 0
        %1902 = vmatprep.subr.bf16.mxu0 0
        %1903 = vmatpush1.bf16.msra.mxu0 0
        %1904 = vmatprep.subr.bf16.mxu0 0
        %1905 = vmatpush1.bf16.msra.mxu0 0
        %1906 = vmatprep.mubr.bf16.mxu0 0
        %1907 = vmatmul.mubr.bf16.gmra.mrb[0].mxu0 %v1668
        %v1908 = vpop.f32.mrb[0].mxu0
        %v1909 = vadd.f32 %v1869, %v1908
        %v1910 = vpop.f32.mrb[0].mxu0
        %v1911 = vpop.f32.mrb[0].mxu0
        %v1912 = vpop.f32.mrb[0].mxu0
        %1913 = vdwg.mxu0
        %v1914 = vld [vmem:[#allocation2] sm:$0xff]
        %v1915 = vld [vmem:[#allocation2 + $0x8] sm:$0xff]
        %v1916 = vld [vmem:[#allocation2 + $0x10] sm:$0xff]
        %v1920 = vcombine.high %v1914, %v1914
        %v1921 = vcombine.high %v1915, %v1915
        %v1922 = vcombine.high %v1916, %v1916
        %1923 = vrot.lane.b32.xlu0 %v1914, 62
        %v1924 = vpop.permute.xlu0 %1923
        %1925 = vrot.lane.b32.xlu0 %v1920, 62
        %v1926 = vpop.permute.xlu0 %1925
        %1927 = vrot.lane.b32.xlu0 %v1915, 62
        %v1928 = vpop.permute.xlu0 %1927
        %1929 = vrot.lane.b32.xlu0 %v1921, 62
        %v1930 = vpop.permute.xlu0 %1929
        %1931 = vrot.lane.b32.xlu0 %v1916, 62
        %v1932 = vpop.permute.xlu0 %1931
        %1933 = vrot.lane.b32.xlu0 %v1922, 62
        %v1934 = vpop.permute.xlu0 %1933
        %v1935 = vsel %vm803, %v1924, %v1926
        %v1936 = vsel %vm803, %v1926, %v1928
        %v1937 = vsel %vm803, %v1928, %v1930
        %v1938 = vsel %vm803, %v1930, %v1932
        %v1939 = vsel %vm803, %v1932, %v1934
        %v1945 = vadd.f32 %v1746, %v1935
        %v1946 = vadd.f32 %v1748, %v1936
        %v1947 = vadd.f32 %v1828, %v1937
        %v1948 = vadd.f32 %v1830, %v1938
        %v1949 = vadd.f32 %v1909, %v1939
        %v1950 = vld [vmem:[#allocation3] sm:$0xff]
        %v1951 = vld [vmem:[#allocation3 + $0x8] sm:$0xff]
        %v1952 = vld [vmem:[#allocation3 + $0x10] sm:$0xff]
        %v1956 = vcombine.high %v1950, %v1950
        %v1957 = vcombine.high %v1951, %v1951
        %v1958 = vcombine.high %v1952, %v1952
        %1959 = vrot.lane.b32.xlu0 %v1950, 62
        %v1960 = vpop.permute.xlu0 %1959
        %1961 = vrot.lane.b32.xlu0 %v1956, 62
        %v1962 = vpop.permute.xlu0 %1961
        %1963 = vrot.lane.b32.xlu0 %v1951, 62
        %v1964 = vpop.permute.xlu0 %1963
        %1965 = vrot.lane.b32.xlu0 %v1957, 62
        %v1966 = vpop.permute.xlu0 %1965
        %1967 = vrot.lane.b32.xlu0 %v1952, 62
        %v1968 = vpop.permute.xlu0 %1967
        %1969 = vrot.lane.b32.xlu0 %v1958, 62
        %v1970 = vpop.permute.xlu0 %1969
        %v1971 = vsel %vm803, %v1960, %v1962
        %v1972 = vsel %vm803, %v1962, %v1964
        %v1973 = vsel %vm803, %v1964, %v1966
        %v1974 = vsel %vm803, %v1966, %v1968
        %v1975 = vsel %vm803, %v1968, %v1970
        %v1981 = vsub.f32 %v1945, %v1971
        %v1982 = vsub.f32 %v1946, %v1972
        %v1983 = vsub.f32 %v1947, %v1973
        %v1984 = vsub.f32 %v1948, %v1974
        %v1985 = vsub.f32 %v1949, %v1975
        %v1986 = vmul.f32 %v1981, %v604
        %v1987 = vmul.f32 %v1982, %v605
        %v1988 = vmul.f32 %v1983, %v606
        %v1989 = vmul.f32 %v1984, %v607
        %v1990 = vmul.f32 %v1985, %v608
        %s1991 = sld [smem:[#allocation10]]
        %v1992 = vmul.f32 %v1986, %v1986
        %v1993 = vmul.f32 %v1987, %v1987
        %v1994 = vmul.f32 %v1988, %v1988
        %v1995 = vmul.f32 %v1989, %v1989
        %v1996 = vmul.f32 %v1990, %v1990
        %v1997 = vsel %vm814, %v1992, 0.0
        %v1998 = vsel %vm814, %v1993, 0.0
        %v1999 = vadd.f32 %v1997, %v1998
        %v2000 = vsel %vm814, %v1994, 0.0
        %v2001 = vadd.f32 %v1999, %v2000
        %v2002 = vsel %vm814, %v1995, 0.0
        %v2003 = vadd.f32 %v2001, %v2002
        %v2004 = vsel %vm814, %v1996, 0.0
        %v2005 = vadd.f32 %v2003, %v2004
        %2006 = vadd.xlane.f32.xlu0 %v2005
        %v2007 = vpop.xlane.xlu0 %2006
        %v2008 = vrot.slane %v2007, 4
        %v2009 = vadd.f32 %v2007, %v2008
        %v2010 = vrot.slane %v2009, 2
        %v2011 = vadd.f32 %v2009, %v2010
        %v2012 = vrot.slane %v2011, 1
        %v2013 = vadd.f32 %v2011, %v2012
        %s2014 = vtos %v2013
        %s2015 = sadd.f32 %s1991, %s2014
        %s2016 = scalar_lea.smem [#allocation10], 0
        %2017 = sst [smem:[%s2016]] %s2015
        // Predicated region
        $region65: #{diffusion_forward.1} parent=51 // pred_check
          %p2018 = pneg %p218
        $region66: #{diffusion_forward.1} parent=51 // pred_check_branch
          %2020 = sbr.rel (%p2018) target = $region68
        $region67: #{diffusion_forward.1} parent=51 // pred_region
          %s2022 = ssub.s32 16, 16
          %2023 = vsyncadd [#allocation6], %s2022
          %2026 = dma.smem_to_hbm [#allocation10], 16, %s8, [#allocation6]
        $region68: #{diffusion_forward.1} parent=51 // pred_fallthru
          _
        // Predicated region
        $region69: #{diffusion_forward.1} parent=51 // pred_check
          %p2027 = pneg %p218
        $region70: #{diffusion_forward.1} parent=51 // pred_check_branch
          %2029 = sbr.rel (%p2027) target = $region72
        $region71: #{diffusion_forward.1} parent=51 // pred_region
          %2030 = dma.done [#allocation6], 16
        $region72: #{diffusion_forward.1} parent=51 // pred_fallthru
          _
        %2031 = sfence
      $region52: #{diffusion_forward.1} parent=5 // pred_fallthru
        _
      %p2032 = scmp.le.s32.totalorder 2, %s17
      // Predicated region
      $region73: #{diffusion_forward.1} parent=5 // pred_check
        %p2033 = pneg %p2032
      $region74: #{diffusion_forward.1} parent=5 // pred_check_branch
        %2035 = sbr.rel (%p2033) target = $region76
      $region75: #{diffusion_forward.1} parent=5 // pred_region
        %s2036 = ssub.s32 %s17, 2
      $region76: #{diffusion_forward.1} parent=5 // pred_fallthru
        _
    $region6: #{diffusion_forward.1} parent=1 // loop_footer
      %s21 = sadd.s32 1, %s17
    $region7: #{diffusion_forward.1} parent=1 // loop_footer_branch
      %16 = sbr.rel target = $region3
    $region8: #{diffusion_forward.1} parent=1 // loop_exit
      _
    %2037 = vsyncpa [#allocation6], 1
    %s2038 = scalar_lea.sflag [#allocation6], 1
    %2039 = vsyncpa %s2038, 1
    %2040 = vsyncpa [#allocation7], 1
    %s2041 = scalar_lea.sflag [#allocation7], 1
    %2042 = vsyncpa %s2041, 1
    %2043 = vsyncpa [#allocation9], 1

</llo_original>
